<compile_context>
chip_gen: v6e
topology: v6e:2x2x1
jax: 0.10.0
libtpu: 0.0.40
codegen_flags: <defaults>
</compile_context>

<pallas_src>
import math

import jax
import jax.numpy as jnp
from jax.experimental import pallas as pl
from jax.experimental.pallas import tpu as pltpu


# ----------------------------------------------------------------------------
# Shape helpers / deterministic parameter construction (mirrors __init__)
# ----------------------------------------------------------------------------
def conv1d_size(length, kernel_size, stride, padding):
    return (length + 2 * padding - kernel_size) // stride + 1


def init_params(key, input_encoding, encoded_size, in_shape, hidden_layers,
                kernel_size=2, stride=2, padding=1):
    length = in_shape[0]
    params = {}

    key, k_emb = jax.random.split(key)
    # nn.Embedding(input_encoding, encoded_size - 1)
    params["emb_table"] = 0.5 * jax.random.normal(
        k_emb, (input_encoding, encoded_size - 1), jnp.float32)

    channels = encoded_size
    convs = []
    for hidden in hidden_layers:
        if length + padding < kernel_size:
            break  # module skips remaining convolutions
        key, kw, kg, kb, km, kv = jax.random.split(key, 6)
        fan_in = channels * kernel_size
        bound = 1.0 / math.sqrt(fan_in)
        w = jax.random.uniform(kw, (hidden, channels, kernel_size),
                               jnp.float32, -bound, bound)      # Conv1d weight (no bias)
        gamma = 1.0 + 0.1 * jax.random.normal(kg, (hidden,), jnp.float32)
        beta = 0.1 * jax.random.normal(kb, (hidden,), jnp.float32)
        rmean = 0.1 * jax.random.normal(km, (hidden,), jnp.float32)
        rvar = 1.0 + 0.1 * jax.random.uniform(kv, (hidden,), jnp.float32)
        convs.append(dict(w=w, gamma=gamma, beta=beta, mean=rmean, var=rvar))
        length = conv1d_size(length, kernel_size, stride, padding)
        channels = hidden
    params["convs"] = convs
    params["flat_size"] = int(channels * length)
    return params


# ----------------------------------------------------------------------------
# Single fused kernel: embedding -> conv stack -> NCW flatten (one sequence/step)
# ----------------------------------------------------------------------------
def _make_encoder_kernel(L0, V, E, layer_cfg, kernel_size, stride, padding,
                         negative_slope=0.01):
    n_layers = len(layer_cfg)

    def kernel(*refs):
        x_ref, emb_ref = refs[0], refs[1]
        o_ref = refs[-1]
        w_refs = refs[2:2 + 2 * n_layers:2]   # per layer: [K, C_in, C_out] (BN-scaled)
        b_refs = refs[3:2 + 2 * n_layers:2]   # per layer: [1, C_out]       (BN shift)

        # ---- CustomDurationEmbeddingConcat (eval mode) ----------------------
        xi = x_ref[...].astype(jnp.int32)                  # x.int(): truncates both channels
        act_idx = xi[:, 0:1]                               # [L0, 1] activity indices
        durs = xi[:, 1:2].astype(jnp.float32)              # [L0, 1] duration channel
        vocab = jax.lax.broadcasted_iota(jnp.int32, (L0, V), 1)
        onehot = (act_idx == vocab).astype(jnp.float32)    # [L0, V] built in VMEM only
        # emb_ref is the embedding table padded with a zero last column ([V, E]);
        # the duration is then added into that last column via a unit-row outer
        # product -- equivalent to concat([embed(acts), durs], -1) with no concat.
        emb = jnp.dot(onehot, emb_ref[...],
                      preferred_element_type=jnp.float32)  # [L0, E]
        dur_col = (jax.lax.broadcasted_iota(jnp.int32, (1, E), 1)
                   == (E - 1)).astype(jnp.float32)         # [1, E] unit row
        act = emb + durs * dur_col                         # [L0, E] channels-last
        # TODO(synk): nn.Dropout (embedding + conv blocks) is train-time stochastic;
        # implemented here as eval-mode identity.

        # ---- Conv1d(k,s,p,bias=False) + folded BatchNorm1d + LeakyReLU ------
        for i in range(n_layers):
            L_in, L_out, C_in, C_out = layer_cfg[i]
            rows = jax.lax.broadcasted_iota(jnp.int32, (L_out, L_in), 0)
            cols = jax.lax.broadcasted_iota(jnp.int32, (L_out, L_in), 1)
            acc = b_refs[i][...]                           # [1, C_out] broadcasts over rows
            for j in range(kernel_size):
                # im2col window element j: output row i reads padded input
                # position stride*i + j, i.e. unpadded row stride*i + j - padding.
                # Out-of-range rows (the zero padding) match no column and
                # contribute zero, so padding + gather collapse into one tiny
                # selection matmul that keeps the activation VMEM-resident.
                sel = (cols == stride * rows + (j - padding)).astype(jnp.float32)
                win = jnp.dot(sel, act,
                              preferred_element_type=jnp.float32)      # [L_out, C_in]
                acc = acc + jnp.dot(win, w_refs[i][j],
                                    preferred_element_type=jnp.float32)  # [L_out, C_out]
            act = jnp.where(acc >= 0, acc, negative_slope * acc)        # LeakyReLU(0.01)

        # ---- flatten(start_dim=1) of the NCW tensor --------------------------
        # PyTorch flattens [B, C, L]; act here is [L, C], so out[c*L + l] = act[l, c].
        # Built as L_last scatter matmuls -> one lane-dense [1, flat] store.
        L_last, C_last = act.shape
        flat = C_last * L_last
        ch = jax.lax.broadcasted_iota(jnp.int32, (C_last, flat), 0)
        pos = jax.lax.broadcasted_iota(jnp.int32, (C_last, flat), 1)
        out = jnp.zeros((1, flat), jnp.float32)
        for l in range(L_last):
            scatter = (pos == ch * L_last + l).astype(jnp.float32)      # [C_last, flat]
            out = out + jnp.dot(act[l:l + 1, :], scatter,
                                preferred_element_type=jnp.float32)
        o_ref[...] = out

    return kernel


# ----------------------------------------------------------------------------
# Forward pass wrapper
# ----------------------------------------------------------------------------
def encoder_forward(x, params, *, kernel_size=2, stride=2, padding=1, eps=1e-5):
    B, L0, _ = x.shape
    emb_table = params["emb_table"].astype(jnp.float32)    # [V, E-1]
    V, Em1 = emb_table.shape
    E = Em1 + 1

    # Embedding table padded with a zero last column so the duration channel can
    # be injected in-kernel without a lane concat (trace-time, tiny).
    emb_ext = jnp.concatenate([emb_table, jnp.zeros((V, 1), jnp.float32)], axis=1)

    inputs = [x.astype(jnp.float32), emb_ext]
    in_specs = [
        pl.BlockSpec((None, L0, 2), lambda b: (b, 0, 0)),   # one sequence per grid step
        pl.BlockSpec((V, E), lambda b: (0, 0)),             # stays VMEM-resident
    ]

    layer_cfg = []
    L, C = L0, E
    for layer in params["convs"]:
        w = layer["w"]                                      # Conv1d weight [C_out, C_in, K]
        C_out = int(w.shape[0])
        # Fold eval-mode BatchNorm1d into the conv weight + a single shift vector
        # (trace-time jnp ops on tiny arrays -- effectively free under jit).
        scale = layer["gamma"] / jnp.sqrt(layer["var"] + eps)              # [C_out]
        shift = (layer["beta"] - layer["mean"] * scale)[None, :]           # [1, C_out]
        w_folded = jnp.transpose(w, (2, 1, 0)) * scale[None, None, :]      # [K, C_in, C_out]

        L_out = conv1d_size(L, kernel_size, stride, padding)
        layer_cfg.append((L, L_out, C, C_out))

        inputs += [w_folded.astype(jnp.float32), shift.astype(jnp.float32)]
        in_specs += [
            pl.BlockSpec((kernel_size, C, C_out), lambda b: (0, 0, 0)),
            pl.BlockSpec((1, C_out), lambda b: (0, 0)),
        ]
        L, C = L_out, C_out

    flat = int(C * L)
    kernel = _make_encoder_kernel(L0, V, E, tuple(layer_cfg),
                                  kernel_size, stride, padding)

    out = pl.pallas_call(
        kernel,
        out_shape=jax.ShapeDtypeStruct((B, 1, flat), jnp.float32),
        grid=(B,),
        in_specs=in_specs,
        out_specs=pl.BlockSpec((None, 1, flat), lambda b: (b, 0, 0)),
        compiler_params=pltpu.CompilerParams(
            # batch axis is fully independent -> shard across TensorCores (v7x).
            dimension_semantics=("parallel",),
        ),
    )(*inputs)
    return out.reshape(B, flat)


# ----------------------------------------------------------------------------
if __name__ == "__main__":
    key = jax.random.PRNGKey(0)
    B, L = 2, 16                 # batch, time steps (length = in_shape[0])
    input_encoding = 8           # number of activity classes
    encoded_size = 8             # embedding size (=channels into conv stack)
    hidden_layers = [16, 32]

    kp, ka, kd = jax.random.split(key, 3)
    params = init_params(kp, input_encoding, encoded_size, (L,), hidden_layers)

    acts = jax.random.randint(ka, (B, L, 1), 0, input_encoding)
    durs = jax.random.randint(kd, (B, L, 1), 0, 10)
    x = jnp.concatenate([acts, durs], axis=-1).astype(jnp.float32)   # [B, L, 2]

    out = jax.jit(lambda inp: encoder_forward(inp, params))(x)
    out = jax.block_until_ready(out)

    # L: 16 -> 9 -> 5 with (k=2, s=2, p=1); flat size = 32 * 5 = 160
    assert out.shape == (B, params["flat_size"]) == (B, 160), out.shape
    assert jnp.all(jnp.isfinite(out))
    print("KERNEL_OK")
</pallas_src>

<mosaic_0001>
module attributes {stable_mosaic.version = 11 : i64} {
  func.func @kernel(%arg0: i32, %arg1: memref<1x16x2xf32, #tpu.memory_space<vmem>>, %arg2: memref<8x8xf32, #tpu.memory_space<vmem>>, %arg3: memref<2x8x16xf32, #tpu.memory_space<vmem>>, %arg4: memref<1x16xf32, #tpu.memory_space<vmem>>, %arg5: memref<2x16x32xf32, #tpu.memory_space<vmem>>, %arg6: memref<1x32xf32, #tpu.memory_space<vmem>>, %arg7: memref<1x1x160xf32, #tpu.memory_space<vmem>>) attributes {dimension_semantics = [#tpu.dimension_semantics<parallel>], iteration_bounds = array<i64: 2>, scalar_prefetch = 0 : i64, scratch_operands = 0 : i64, tpu.core_type = #tpu.core_type<tc>, window_params = [{transform_indices = @transform_0, window_bounds = array<i64: 1, 16, 2>}, {pipeline_mode = #tpu.pipeline_mode<synchronous>, transform_indices = @transform_1, window_bounds = array<i64: 8, 8>}, {pipeline_mode = #tpu.pipeline_mode<synchronous>, transform_indices = @transform_2, window_bounds = array<i64: 2, 8, 16>}, {pipeline_mode = #tpu.pipeline_mode<synchronous>, transform_indices = @transform_3, window_bounds = array<i64: 1, 16>}, {pipeline_mode = #tpu.pipeline_mode<synchronous>, transform_indices = @transform_4, window_bounds = array<i64: 2, 16, 32>}, {pipeline_mode = #tpu.pipeline_mode<synchronous>, transform_indices = @transform_5, window_bounds = array<i64: 1, 32>}, {transform_indices = @transform_6, window_bounds = array<i64: 1, 1, 160>}]} {
    %c0 = arith.constant 0 : index
    %c0_0 = arith.constant 0 : index
    %c0_1 = arith.constant 0 : index
    %0 = vector.load %arg1[%c0, %c0_0, %c0_1] : memref<1x16x2xf32, #tpu.memory_space<vmem>>, vector<1x16x2xf32>
    %1 = vector.shape_cast %0 : vector<1x16x2xf32> to vector<16x2xf32>
    %2 = arith.fptosi %1 : vector<16x2xf32> to vector<16x2xi32>
    %3 = vector.extract_strided_slice %2 {offsets = [0, 0], sizes = [16, 1], strides = [1, 1]} : vector<16x2xi32> to vector<16x1xi32>
    %4 = vector.extract_strided_slice %2 {offsets = [0, 1], sizes = [16, 1], strides = [1, 1]} : vector<16x2xi32> to vector<16x1xi32>
    %5 = arith.sitofp %4 : vector<16x1xi32> to vector<16x1xf32>
    %6 = tpu.iota {dimensions = array<i32: 1>} : vector<16x8xi32>
    %7 = vector.broadcast %3 : vector<16x1xi32> to vector<16x8xi32>
    %8 = arith.cmpi eq, %7, %6 : vector<16x8xi32>
    %9 = arith.extui %8 : vector<16x8xi1> to vector<16x8xi32>
    %10 = arith.sitofp %9 : vector<16x8xi32> to vector<16x8xf32>
    %c0_2 = arith.constant 0 : index
    %c0_3 = arith.constant 0 : index
    %11 = vector.load %arg2[%c0_2, %c0_3] : memref<8x8xf32, #tpu.memory_space<vmem>>, vector<8x8xf32>
    %cst = arith.constant dense<0.000000e+00> : vector<16x8xf32>
    %12 = tpu.matmul %10, %11, %cst {dimension_numbers = #tpu.dot_dimension_numbers<[1], [0], [0], [1], [0, 0, 1, 1], [], []>} : vector<16x8xf32>, vector<8x8xf32>, vector<16x8xf32> -> vector<16x8xf32>
    %13 = tpu.iota {dimensions = array<i32: 1>} : vector<1x8xi32>
    %c7_i32 = arith.constant 7 : i32
    %14 = vector.broadcast %c7_i32 : i32 to vector<1x8xi32>
    %15 = arith.cmpi eq, %13, %14 : vector<1x8xi32>
    %16 = arith.extui %15 : vector<1x8xi1> to vector<1x8xi32>
    %17 = arith.sitofp %16 : vector<1x8xi32> to vector<1x8xf32>
    %18 = vector.broadcast %5 : vector<16x1xf32> to vector<16x8xf32>
    %19 = vector.broadcast %17 : vector<1x8xf32> to vector<16x8xf32>
    %20 = arith.mulf %18, %19 : vector<16x8xf32>
    %21 = arith.addf %12, %20 : vector<16x8xf32>
    %22 = tpu.iota {dimensions = array<i32: 0>} : vector<9x16xi32>
    %23 = tpu.iota {dimensions = array<i32: 1>} : vector<9x16xi32>
    %c0_4 = arith.constant 0 : index
    %c0_5 = arith.constant 0 : index
    %24 = vector.load %arg4[%c0_4, %c0_5] : memref<1x16xf32, #tpu.memory_space<vmem>>, vector<1x16xf32>
    %c2_i32 = arith.constant 2 : i32
    %25 = vector.broadcast %c2_i32 : i32 to vector<9x16xi32>
    %26 = arith.muli %25, %22 : vector<9x16xi32>
    %c-1_i32 = arith.constant -1 : i32
    %27 = vector.broadcast %c-1_i32 : i32 to vector<9x16xi32>
    %28 = arith.addi %26, %27 : vector<9x16xi32>
    %29 = arith.cmpi eq, %23, %28 : vector<9x16xi32>
    %30 = arith.extui %29 : vector<9x16xi1> to vector<9x16xi32>
    %31 = arith.sitofp %30 : vector<9x16xi32> to vector<9x16xf32>
    %cst_6 = arith.constant dense<0.000000e+00> : vector<9x8xf32>
    %32 = tpu.matmul %31, %21, %cst_6 {dimension_numbers = #tpu.dot_dimension_numbers<[1], [0], [0], [1], [0, 0, 1, 1], [], []>} : vector<9x16xf32>, vector<16x8xf32>, vector<9x8xf32> -> vector<9x8xf32>
    %c0_7 = arith.constant 0 : index
    %c0_8 = arith.constant 0 : index
    %c0_9 = arith.constant 0 : index
    %33 = vector.load %arg3[%c0_7, %c0_8, %c0_9] : memref<2x8x16xf32, #tpu.memory_space<vmem>>, vector<1x8x16xf32>
    %34 = vector.shape_cast %33 : vector<1x8x16xf32> to vector<8x16xf32>
    %cst_10 = arith.constant dense<0.000000e+00> : vector<9x16xf32>
    %35 = tpu.matmul %32, %34, %cst_10 {dimension_numbers = #tpu.dot_dimension_numbers<[1], [0], [0], [1], [0, 0, 1, 1], [], []>} : vector<9x8xf32>, vector<8x16xf32>, vector<9x16xf32> -> vector<9x16xf32>
    %36 = vector.broadcast %24 : vector<1x16xf32> to vector<9x16xf32>
    %37 = arith.addf %36, %35 : vector<9x16xf32>
    %c2_i32_11 = arith.constant 2 : i32
    %38 = vector.broadcast %c2_i32_11 : i32 to vector<9x16xi32>
    %39 = arith.muli %38, %22 : vector<9x16xi32>
    %c0_i32 = arith.constant 0 : i32
    %40 = vector.broadcast %c0_i32 : i32 to vector<9x16xi32>
    %41 = arith.addi %39, %40 : vector<9x16xi32>
    %42 = arith.cmpi eq, %23, %41 : vector<9x16xi32>
    %43 = arith.extui %42 : vector<9x16xi1> to vector<9x16xi32>
    %44 = arith.sitofp %43 : vector<9x16xi32> to vector<9x16xf32>
    %cst_12 = arith.constant dense<0.000000e+00> : vector<9x8xf32>
    %45 = tpu.matmul %44, %21, %cst_12 {dimension_numbers = #tpu.dot_dimension_numbers<[1], [0], [0], [1], [0, 0, 1, 1], [], []>} : vector<9x16xf32>, vector<16x8xf32>, vector<9x8xf32> -> vector<9x8xf32>
    %c1 = arith.constant 1 : index
    %c0_13 = arith.constant 0 : index
    %c0_14 = arith.constant 0 : index
    %46 = vector.load %arg3[%c1, %c0_13, %c0_14] : memref<2x8x16xf32, #tpu.memory_space<vmem>>, vector<1x8x16xf32>
    %47 = vector.shape_cast %46 : vector<1x8x16xf32> to vector<8x16xf32>
    %cst_15 = arith.constant dense<0.000000e+00> : vector<9x16xf32>
    %48 = tpu.matmul %45, %47, %cst_15 {dimension_numbers = #tpu.dot_dimension_numbers<[1], [0], [0], [1], [0, 0, 1, 1], [], []>} : vector<9x8xf32>, vector<8x16xf32>, vector<9x16xf32> -> vector<9x16xf32>
    %49 = arith.addf %37, %48 : vector<9x16xf32>
    %cst_16 = arith.constant 0.000000e+00 : f32
    %50 = vector.broadcast %cst_16 : f32 to vector<9x16xf32>
    %51 = arith.cmpf oge, %49, %50 : vector<9x16xf32>
    %cst_17 = arith.constant 0.00999999977 : f32
    %52 = vector.broadcast %cst_17 : f32 to vector<9x16xf32>
    %53 = arith.mulf %52, %49 : vector<9x16xf32>
    %54 = arith.select %51, %49, %53 : vector<9x16xi1>, vector<9x16xf32>
    %55 = tpu.iota {dimensions = array<i32: 0>} : vector<5x9xi32>
    %56 = tpu.iota {dimensions = array<i32: 1>} : vector<5x9xi32>
    %c0_18 = arith.constant 0 : index
    %c0_19 = arith.constant 0 : index
    %57 = vector.load %arg6[%c0_18, %c0_19] : memref<1x32xf32, #tpu.memory_space<vmem>>, vector<1x32xf32>
    %c2_i32_20 = arith.constant 2 : i32
    %58 = vector.broadcast %c2_i32_20 : i32 to vector<5x9xi32>
    %59 = arith.muli %58, %55 : vector<5x9xi32>
    %c-1_i32_21 = arith.constant -1 : i32
    %60 = vector.broadcast %c-1_i32_21 : i32 to vector<5x9xi32>
    %61 = arith.addi %59, %60 : vector<5x9xi32>
    %62 = arith.cmpi eq, %56, %61 : vector<5x9xi32>
    %63 = arith.extui %62 : vector<5x9xi1> to vector<5x9xi32>
    %64 = arith.sitofp %63 : vector<5x9xi32> to vector<5x9xf32>
    %cst_22 = arith.constant dense<0.000000e+00> : vector<5x16xf32>
    %65 = tpu.matmul %64, %54, %cst_22 {dimension_numbers = #tpu.dot_dimension_numbers<[1], [0], [0], [1], [0, 0, 1, 1], [], []>} : vector<5x9xf32>, vector<9x16xf32>, vector<5x16xf32> -> vector<5x16xf32>
    %c0_23 = arith.constant 0 : index
    %c0_24 = arith.constant 0 : index
    %c0_25 = arith.constant 0 : index
    %66 = vector.load %arg5[%c0_23, %c0_24, %c0_25] : memref<2x16x32xf32, #tpu.memory_space<vmem>>, vector<1x16x32xf32>
    %67 = vector.shape_cast %66 : vector<1x16x32xf32> to vector<16x32xf32>
    %cst_26 = arith.constant dense<0.000000e+00> : vector<5x32xf32>
    %68 = tpu.matmul %65, %67, %cst_26 {dimension_numbers = #tpu.dot_dimension_numbers<[1], [0], [0], [1], [0, 0, 1, 1], [], []>} : vector<5x16xf32>, vector<16x32xf32>, vector<5x32xf32> -> vector<5x32xf32>
    %69 = vector.broadcast %57 : vector<1x32xf32> to vector<5x32xf32>
    %70 = arith.addf %69, %68 : vector<5x32xf32>
    %c2_i32_27 = arith.constant 2 : i32
    %71 = vector.broadcast %c2_i32_27 : i32 to vector<5x9xi32>
    %72 = arith.muli %71, %55 : vector<5x9xi32>
    %c0_i32_28 = arith.constant 0 : i32
    %73 = vector.broadcast %c0_i32_28 : i32 to vector<5x9xi32>
    %74 = arith.addi %72, %73 : vector<5x9xi32>
    %75 = arith.cmpi eq, %56, %74 : vector<5x9xi32>
    %76 = arith.extui %75 : vector<5x9xi1> to vector<5x9xi32>
    %77 = arith.sitofp %76 : vector<5x9xi32> to vector<5x9xf32>
    %cst_29 = arith.constant dense<0.000000e+00> : vector<5x16xf32>
    %78 = tpu.matmul %77, %54, %cst_29 {dimension_numbers = #tpu.dot_dimension_numbers<[1], [0], [0], [1], [0, 0, 1, 1], [], []>} : vector<5x9xf32>, vector<9x16xf32>, vector<5x16xf32> -> vector<5x16xf32>
    %c1_30 = arith.constant 1 : index
    %c0_31 = arith.constant 0 : index
    %c0_32 = arith.constant 0 : index
    %79 = vector.load %arg5[%c1_30, %c0_31, %c0_32] : memref<2x16x32xf32, #tpu.memory_space<vmem>>, vector<1x16x32xf32>
    %80 = vector.shape_cast %79 : vector<1x16x32xf32> to vector<16x32xf32>
    %cst_33 = arith.constant dense<0.000000e+00> : vector<5x32xf32>
    %81 = tpu.matmul %78, %80, %cst_33 {dimension_numbers = #tpu.dot_dimension_numbers<[1], [0], [0], [1], [0, 0, 1, 1], [], []>} : vector<5x16xf32>, vector<16x32xf32>, vector<5x32xf32> -> vector<5x32xf32>
    %82 = arith.addf %70, %81 : vector<5x32xf32>
    %cst_34 = arith.constant 0.000000e+00 : f32
    %83 = vector.broadcast %cst_34 : f32 to vector<5x32xf32>
    %84 = arith.cmpf oge, %82, %83 : vector<5x32xf32>
    %cst_35 = arith.constant 0.00999999977 : f32
    %85 = vector.broadcast %cst_35 : f32 to vector<5x32xf32>
    %86 = arith.mulf %85, %82 : vector<5x32xf32>
    %87 = arith.select %84, %82, %86 : vector<5x32xi1>, vector<5x32xf32>
    %88 = tpu.iota {dimensions = array<i32: 0>} : vector<32x160xi32>
    %89 = tpu.iota {dimensions = array<i32: 1>} : vector<32x160xi32>
    %cst_36 = arith.constant 0.000000e+00 : f32
    %90 = vector.broadcast %cst_36 : f32 to vector<1x160xf32>
    %c5_i32 = arith.constant 5 : i32
    %91 = vector.broadcast %c5_i32 : i32 to vector<32x160xi32>
    %92 = arith.muli %88, %91 : vector<32x160xi32>
    %c0_i32_37 = arith.constant 0 : i32
    %93 = vector.broadcast %c0_i32_37 : i32 to vector<32x160xi32>
    %94 = arith.addi %92, %93 : vector<32x160xi32>
    %95 = arith.cmpi eq, %89, %94 : vector<32x160xi32>
    %96 = arith.extui %95 : vector<32x160xi1> to vector<32x160xi32>
    %97 = arith.sitofp %96 : vector<32x160xi32> to vector<32x160xf32>
    %98 = vector.extract_strided_slice %87 {offsets = [0, 0], sizes = [1, 32], strides = [1, 1]} : vector<5x32xf32> to vector<1x32xf32>
    %cst_38 = arith.constant dense<0.000000e+00> : vector<1x160xf32>
    %99 = tpu.matmul %98, %97, %cst_38 {dimension_numbers = #tpu.dot_dimension_numbers<[1], [0], [0], [1], [0, 0, 1, 1], [], []>} : vector<1x32xf32>, vector<32x160xf32>, vector<1x160xf32> -> vector<1x160xf32>
    %100 = arith.addf %90, %99 : vector<1x160xf32>
    %c5_i32_39 = arith.constant 5 : i32
    %101 = vector.broadcast %c5_i32_39 : i32 to vector<32x160xi32>
    %102 = arith.muli %88, %101 : vector<32x160xi32>
    %c1_i32 = arith.constant 1 : i32
    %103 = vector.broadcast %c1_i32 : i32 to vector<32x160xi32>
    %104 = arith.addi %102, %103 : vector<32x160xi32>
    %105 = arith.cmpi eq, %89, %104 : vector<32x160xi32>
    %106 = arith.extui %105 : vector<32x160xi1> to vector<32x160xi32>
    %107 = arith.sitofp %106 : vector<32x160xi32> to vector<32x160xf32>
    %108 = vector.extract_strided_slice %87 {offsets = [1, 0], sizes = [1, 32], strides = [1, 1]} : vector<5x32xf32> to vector<1x32xf32>
    %cst_40 = arith.constant dense<0.000000e+00> : vector<1x160xf32>
    %109 = tpu.matmul %108, %107, %cst_40 {dimension_numbers = #tpu.dot_dimension_numbers<[1], [0], [0], [1], [0, 0, 1, 1], [], []>} : vector<1x32xf32>, vector<32x160xf32>, vector<1x160xf32> -> vector<1x160xf32>
    %110 = arith.addf %100, %109 : vector<1x160xf32>
    %c5_i32_41 = arith.constant 5 : i32
    %111 = vector.broadcast %c5_i32_41 : i32 to vector<32x160xi32>
    %112 = arith.muli %88, %111 : vector<32x160xi32>
    %c2_i32_42 = arith.constant 2 : i32
    %113 = vector.broadcast %c2_i32_42 : i32 to vector<32x160xi32>
    %114 = arith.addi %112, %113 : vector<32x160xi32>
    %115 = arith.cmpi eq, %89, %114 : vector<32x160xi32>
    %116 = arith.extui %115 : vector<32x160xi1> to vector<32x160xi32>
    %117 = arith.sitofp %116 : vector<32x160xi32> to vector<32x160xf32>
    %118 = vector.extract_strided_slice %87 {offsets = [2, 0], sizes = [1, 32], strides = [1, 1]} : vector<5x32xf32> to vector<1x32xf32>
    %cst_43 = arith.constant dense<0.000000e+00> : vector<1x160xf32>
    %119 = tpu.matmul %118, %117, %cst_43 {dimension_numbers = #tpu.dot_dimension_numbers<[1], [0], [0], [1], [0, 0, 1, 1], [], []>} : vector<1x32xf32>, vector<32x160xf32>, vector<1x160xf32> -> vector<1x160xf32>
    %120 = arith.addf %110, %119 : vector<1x160xf32>
    %c5_i32_44 = arith.constant 5 : i32
    %121 = vector.broadcast %c5_i32_44 : i32 to vector<32x160xi32>
    %122 = arith.muli %88, %121 : vector<32x160xi32>
    %c3_i32 = arith.constant 3 : i32
    %123 = vector.broadcast %c3_i32 : i32 to vector<32x160xi32>
    %124 = arith.addi %122, %123 : vector<32x160xi32>
    %125 = arith.cmpi eq, %89, %124 : vector<32x160xi32>
    %126 = arith.extui %125 : vector<32x160xi1> to vector<32x160xi32>
    %127 = arith.sitofp %126 : vector<32x160xi32> to vector<32x160xf32>
    %128 = vector.extract_strided_slice %87 {offsets = [3, 0], sizes = [1, 32], strides = [1, 1]} : vector<5x32xf32> to vector<1x32xf32>
    %cst_45 = arith.constant dense<0.000000e+00> : vector<1x160xf32>
    %129 = tpu.matmul %128, %127, %cst_45 {dimension_numbers = #tpu.dot_dimension_numbers<[1], [0], [0], [1], [0, 0, 1, 1], [], []>} : vector<1x32xf32>, vector<32x160xf32>, vector<1x160xf32> -> vector<1x160xf32>
    %130 = arith.addf %120, %129 : vector<1x160xf32>
    %c5_i32_46 = arith.constant 5 : i32
    %131 = vector.broadcast %c5_i32_46 : i32 to vector<32x160xi32>
    %132 = arith.muli %88, %131 : vector<32x160xi32>
    %c4_i32 = arith.constant 4 : i32
    %133 = vector.broadcast %c4_i32 : i32 to vector<32x160xi32>
    %134 = arith.addi %132, %133 : vector<32x160xi32>
    %135 = arith.cmpi eq, %89, %134 : vector<32x160xi32>
    %136 = arith.extui %135 : vector<32x160xi1> to vector<32x160xi32>
    %137 = arith.sitofp %136 : vector<32x160xi32> to vector<32x160xf32>
    %138 = vector.extract_strided_slice %87 {offsets = [4, 0], sizes = [1, 32], strides = [1, 1]} : vector<5x32xf32> to vector<1x32xf32>
    %cst_47 = arith.constant dense<0.000000e+00> : vector<1x160xf32>
    %139 = tpu.matmul %138, %137, %cst_47 {dimension_numbers = #tpu.dot_dimension_numbers<[1], [0], [0], [1], [0, 0, 1, 1], [], []>} : vector<1x32xf32>, vector<32x160xf32>, vector<1x160xf32> -> vector<1x160xf32>
    %140 = arith.addf %130, %139 : vector<1x160xf32>
    %c0_48 = arith.constant 0 : index
    %c0_49 = arith.constant 0 : index
    %c0_50 = arith.constant 0 : index
    %141 = vector.load %arg7[%c0_48, %c0_49, %c0_50] : memref<1x1x160xf32, #tpu.memory_space<vmem>>, vector<1x1x160xf32>
    %142 = vector.shape_cast %141 : vector<1x1x160xf32> to vector<1x160xf32>
    %143 = vector.shape_cast %140 : vector<1x160xf32> to vector<1x1x160xf32>
    tpu.vector_store %arg7[%c0_48, %c0_49, %c0_50], %143 {strides = array<i32>} : memref<1x1x160xf32, #tpu.memory_space<vmem>>, vector<1x1x160xf32>,
    return
  }
  func.func @transform_0(%arg0: i32) -> (i32, i32, i32) {
    %c0_i32 = arith.constant 0 : i32
    %c0_i32_0 = arith.constant 0 : i32
    %c0_i32_1 = arith.constant 0 : i32
    return %arg0, %c0_i32, %c0_i32_0 : i32, i32, i32
  }
  func.func @transform_1(%arg0: i32) -> (i32, i32) {
    %c0_i32 = arith.constant 0 : i32
    %c0_i32_0 = arith.constant 0 : i32
    %c0_i32_1 = arith.constant 0 : i32
    return %c0_i32, %c0_i32_0 : i32, i32
  }
  func.func @transform_2(%arg0: i32) -> (i32, i32, i32) {
    %c0_i32 = arith.constant 0 : i32
    %c0_i32_0 = arith.constant 0 : i32
    %c0_i32_1 = arith.constant 0 : i32
    %c0_i32_2 = arith.constant 0 : i32
    return %c0_i32, %c0_i32_0, %c0_i32_1 : i32, i32, i32
  }
  func.func @transform_3(%arg0: i32) -> (i32, i32) {
    %c0_i32 = arith.constant 0 : i32
    %c0_i32_0 = arith.constant 0 : i32
    %c0_i32_1 = arith.constant 0 : i32
    return %c0_i32, %c0_i32_0 : i32, i32
  }
  func.func @transform_4(%arg0: i32) -> (i32, i32, i32) {
    %c0_i32 = arith.constant 0 : i32
    %c0_i32_0 = arith.constant 0 : i32
    %c0_i32_1 = arith.constant 0 : i32
    %c0_i32_2 = arith.constant 0 : i32
    return %c0_i32, %c0_i32_0, %c0_i32_1 : i32, i32, i32
  }
  func.func @transform_5(%arg0: i32) -> (i32, i32) {
    %c0_i32 = arith.constant 0 : i32
    %c0_i32_0 = arith.constant 0 : i32
    %c0_i32_1 = arith.constant 0 : i32
    return %c0_i32, %c0_i32_0 : i32, i32
  }
  func.func @transform_6(%arg0: i32) -> (i32, i32, i32) {
    %c0_i32 = arith.constant 0 : i32
    %c0_i32_0 = arith.constant 0 : i32
    %c0_i32_1 = arith.constant 0 : i32
    return %arg0, %c0_i32, %c0_i32_0 : i32, i32, i32
  }
}

</mosaic_0001>

<llo_original>
// kernel: _lambda_.1
$region0: #{_lambda_.1}
  #allocation0 [shape = 'u32[]', space=smem, size = 0x4, offset = 0x4, fixed_abs, tag = 'smem constant byte address 0x4 - core index']
  #allocation1 [shape = 'u32[144,128]{1,0:T(1,128)}', space=vmem, size = 0x12000, scoped, tag = 'internal scratch']
  %s0 = inlined_call_operand.vmem [shape: f32[2,16,2], index: 0, kind: input, shape index: {}]
  %s1 = inlined_call_operand.vmem [shape: f32[8,8], index: 1, kind: input, shape index: {}]
  %s2 = inlined_call_operand.hbm [shape: f32[2,8,16], index: 2, kind: input, shape index: {}]
  %s3 = inlined_call_operand.vmem [shape: f32[1,16], index: 3, kind: input, shape index: {}]
  %s4 = inlined_call_operand.vmem [shape: f32[2,16,32], index: 4, kind: input, shape index: {}]
  %s5 = inlined_call_operand.vmem [shape: f32[1,32], index: 5, kind: input, shape index: {}]
  %s6 = inlined_call_operand.vmem [shape: f32[2,1,160], index: 6, kind: output, shape index: {}]
  %s7 = sld [smem:[#allocation0]]
  $region61: #{_lambda_.1} parent=0
    _
  %s9 = ssub.s32 1, %s7
  %s10 = scalar_select 0, %s9, %s7
  $region1: #{_lambda_.1} parent=0
    #allocation2 [shape = 'u8[8192]{0}', space=vmem, size = 0x2000, scoped, tag = 'input window, operand 2, single buffered']
    #allocation3 [shape = 's32[2]{0}', space=sflag, size = 0x8, scoped, tag = 'scoped memory for _lambda_.1']
    %11 = vsyncpa [#allocation3], 0
    loop: start=0, step=1, limit=4
    $region2: #{_lambda_.1} parent=1 // loop_pre_header
      _
    $region3: #{_lambda_.1} parent=1 // loop_header
      %s13 = sphi 0, %s17
      %p14 = scmp.ge.s32.totalorder %s13, 4
      %s23 = sphi 0, %s25
      %s26 = sphi 0, %s23
      %s27 = sphi 0, %s26
      %s43 = sphi 0, %s27
      %s47 = sphi 0, %s47
      %s49 = sphi 0, %s47
      %s50 = sphi 0, %s49
      %s64 = sphi 0, %s50
      %s68 = sphi 0, %s68
      %s70 = sphi 0, %s68
      %s71 = sphi 0, %s70
      %s85 = sphi 0, %s71
      %s89 = sphi 0, %s89
      %s91 = sphi 0, %s89
      %s92 = sphi 0, %s91
      %s106 = sphi 0, %s92
      %s110 = sphi 0, %s110
      %s112 = sphi 0, %s110
      %s113 = sphi 0, %s112
      %s127 = sphi 0, %s113
      %s131 = sphi 0, %s131
      %s133 = sphi 0, %s131
      %s134 = sphi 0, %s133
      %s148 = sphi 0, %s134
      %s154 = sphi 0, %s156
      %s157 = sphi 0, %s154
      %s158 = sphi 0, %s157
      %s174 = sphi 0, %s158
    $region4: #{_lambda_.1} parent=1 // loop_header_branch
      %16 = sbr.rel (%p14) target = $region8
    $region5: #{_lambda_.1} parent=1 // loop_body
      %s18 = ssub.s32 %s13, 1
      %s19 = ssub.s32 %s13, 2
      %s20 = sadd.s32 %s13, 1
      %s21 = ssub.s32 %s13, %s20
      %p22 = scmp.eq.s32.totalorder %s21, 0
      %s24 = sadd.s32 %s23, 1
      %s25 = scalar_select %p22, %s23, %s24
      %p28 = pneg %p22
      %p29 = scmp.eq.s32.totalorder %s13, 1
      %p30 = por %p28, %p29
      %p31 = scmp.ne.s32.totalorder %s23, %s26
      %p32 = scmp.eq.s32.totalorder %s13, 0
      %p33 = por %p31, %p32
      %p34 = scmp.ne.s32.totalorder %s23, %s26
      %p35 = scmp.eq.s32.totalorder %s18, 1
      %p36 = por %p34, %p35
      %p37 = scmp.ne.s32.totalorder %s26, %s27
      %p38 = scmp.eq.s32.totalorder %s18, 0
      %p39 = por %p37, %p38
      %p40 = scmp.ne.s32.totalorder %s26, %s27
      %p41 = scmp.eq.s32.totalorder %s19, 1
      %p42 = por %p40, %p41
      %p44 = scmp.ne.s32.totalorder %s27, %s43
      %p45 = scmp.eq.s32.totalorder %s19, 0
      %p46 = por %p44, %p45
      %s48 = sadd.s32 %s47, 1
      %p51 = scmp.eq.s32.totalorder %s13, 1
      %p52 = scmp.ne.s32.totalorder %s47, %s49
      %p53 = scmp.eq.s32.totalorder %s13, 0
      %p54 = por %p52, %p53
      %p55 = scmp.ne.s32.totalorder %s47, %s49
      %p56 = scmp.eq.s32.totalorder %s18, 1
      %p57 = por %p55, %p56
      %p58 = scmp.ne.s32.totalorder %s49, %s50
      %p59 = scmp.eq.s32.totalorder %s18, 0
      %p60 = por %p58, %p59
      %p61 = scmp.ne.s32.totalorder %s49, %s50
      %p62 = scmp.eq.s32.totalorder %s19, 1
      %p63 = por %p61, %p62
      %p65 = scmp.ne.s32.totalorder %s50, %s64
      %p66 = scmp.eq.s32.totalorder %s19, 0
      %p67 = por %p65, %p66
      %s69 = sadd.s32 %s68, 1
      %p72 = scmp.eq.s32.totalorder %s13, 1
      %p73 = scmp.ne.s32.totalorder %s68, %s70
      %p74 = scmp.eq.s32.totalorder %s13, 0
      %p75 = por %p73, %p74
      %p76 = scmp.ne.s32.totalorder %s68, %s70
      %p77 = scmp.eq.s32.totalorder %s18, 1
      %p78 = por %p76, %p77
      %p79 = scmp.ne.s32.totalorder %s70, %s71
      %p80 = scmp.eq.s32.totalorder %s18, 0
      %p81 = por %p79, %p80
      %p82 = scmp.ne.s32.totalorder %s70, %s71
      %p83 = scmp.eq.s32.totalorder %s19, 1
      %p84 = por %p82, %p83
      %p86 = scmp.ne.s32.totalorder %s71, %s85
      %p87 = scmp.eq.s32.totalorder %s19, 0
      %p88 = por %p86, %p87
      %s90 = sadd.s32 %s89, 1
      %p93 = scmp.eq.s32.totalorder %s13, 1
      %p94 = scmp.ne.s32.totalorder %s89, %s91
      %p95 = scmp.eq.s32.totalorder %s13, 0
      %p96 = por %p94, %p95
      %p97 = scmp.ne.s32.totalorder %s89, %s91
      %p98 = scmp.eq.s32.totalorder %s18, 1
      %p99 = por %p97, %p98
      %p100 = scmp.ne.s32.totalorder %s91, %s92
      %p101 = scmp.eq.s32.totalorder %s18, 0
      %p102 = por %p100, %p101
      %p103 = scmp.ne.s32.totalorder %s91, %s92
      %p104 = scmp.eq.s32.totalorder %s19, 1
      %p105 = por %p103, %p104
      %p107 = scmp.ne.s32.totalorder %s92, %s106
      %p108 = scmp.eq.s32.totalorder %s19, 0
      %p109 = por %p107, %p108
      %s111 = sadd.s32 %s110, 1
      %p114 = scmp.eq.s32.totalorder %s13, 1
      %p115 = scmp.ne.s32.totalorder %s110, %s112
      %p116 = scmp.eq.s32.totalorder %s13, 0
      %p117 = por %p115, %p116
      %p118 = scmp.ne.s32.totalorder %s110, %s112
      %p119 = scmp.eq.s32.totalorder %s18, 1
      %p120 = por %p118, %p119
      %p121 = scmp.ne.s32.totalorder %s112, %s113
      %p122 = scmp.eq.s32.totalorder %s18, 0
      %p123 = por %p121, %p122
      %p124 = scmp.ne.s32.totalorder %s112, %s113
      %p125 = scmp.eq.s32.totalorder %s19, 1
      %p126 = por %p124, %p125
      %p128 = scmp.ne.s32.totalorder %s113, %s127
      %p129 = scmp.eq.s32.totalorder %s19, 0
      %p130 = por %p128, %p129
      %s132 = sadd.s32 %s131, 1
      %p135 = scmp.eq.s32.totalorder %s13, 1
      %p136 = scmp.ne.s32.totalorder %s131, %s133
      %p137 = scmp.eq.s32.totalorder %s13, 0
      %p138 = por %p136, %p137
      %p139 = scmp.ne.s32.totalorder %s131, %s133
      %p140 = scmp.eq.s32.totalorder %s18, 1
      %p141 = por %p139, %p140
      %p142 = scmp.ne.s32.totalorder %s133, %s134
      %p143 = scmp.eq.s32.totalorder %s18, 0
      %p144 = por %p142, %p143
      %p145 = scmp.ne.s32.totalorder %s133, %s134
      %p146 = scmp.eq.s32.totalorder %s19, 1
      %p147 = por %p145, %p146
      %p149 = scmp.ne.s32.totalorder %s134, %s148
      %p150 = scmp.eq.s32.totalorder %s19, 0
      %p151 = por %p149, %p150
      %s152 = ssub.s32 %s13, %s20
      %p153 = scmp.eq.s32.totalorder %s152, 0
      %s155 = sadd.s32 %s154, 1
      %s156 = scalar_select %p153, %s154, %s155
      %p159 = pneg %p153
      %p160 = scmp.eq.s32.totalorder %s13, 1
      %p161 = por %p159, %p160
      %p162 = scmp.ne.s32.totalorder %s154, %s157
      %p163 = scmp.eq.s32.totalorder %s13, 0
      %p164 = por %p162, %p163
      %p165 = scmp.ne.s32.totalorder %s154, %s157
      %p166 = scmp.eq.s32.totalorder %s18, 1
      %p167 = por %p165, %p166
      %p168 = scmp.ne.s32.totalorder %s157, %s158
      %p169 = scmp.eq.s32.totalorder %s18, 0
      %p170 = por %p168, %p169
      %p171 = scmp.ne.s32.totalorder %s157, %s158
      %p172 = scmp.eq.s32.totalorder %s19, 1
      %p173 = por %p171, %p172
      %p175 = scmp.ne.s32.totalorder %s158, %s174
      %p176 = scmp.eq.s32.totalorder %s19, 0
      %p177 = por %p175, %p176
      %p178 = scmp.le.s32.totalorder 1, %s13
      %p179 = scmp.lt.s32.totalorder %s13, 3
      %p180 = pnand %p178, %p179
      %p181 = pneg %p180
      // Predicated region
      $region9: #{_lambda_.1} parent=5 // pred_check
        _
      $region10: #{_lambda_.1} parent=5 // pred_check_branch
        %183 = sbr.rel (%p180) target = $region12
      $region11: #{_lambda_.1} parent=5 // pred_region
        %s184 = ssub.s32 %s13, 1
        // Predicated region
        $region13: #{_lambda_.1} parent=11 // pred_check
          %p185 = pneg %p60
        $region14: #{_lambda_.1} parent=11 // pred_check_branch
          %187 = sbr.rel (%p185) target = $region16
        $region15: #{_lambda_.1} parent=11 // pred_region
          _
        $region16: #{_lambda_.1} parent=11 // pred_fallthru
          _
        // Predicated region
        $region17: #{_lambda_.1} parent=11 // pred_check
          %p188 = pneg %p81
        $region18: #{_lambda_.1} parent=11 // pred_check_branch
          %190 = sbr.rel (%p188) target = $region20
        $region19: #{_lambda_.1} parent=11 // pred_region
          %s192 = ssub.s32 256, 256
          %193 = vsyncadd [#allocation3], %s192
          %s194 = sshll.u32 [#allocation2], 4
          %s195 = int_to_ptr.vmem [resolvable:$true] %s194
          %200 = dma.hbm_to_vmem [thread:$0]  %s2, 256, %s195, [#allocation3], 128, 128, 8
        $region20: #{_lambda_.1} parent=11 // pred_fallthru
          _
        // Predicated region
        $region21: #{_lambda_.1} parent=11 // pred_check
          %p201 = pneg %p102
        $region22: #{_lambda_.1} parent=11 // pred_check_branch
          %203 = sbr.rel (%p201) target = $region24
        $region23: #{_lambda_.1} parent=11 // pred_region
          _
        $region24: #{_lambda_.1} parent=11 // pred_fallthru
          _
        // Predicated region
        $region25: #{_lambda_.1} parent=11 // pred_check
          %p204 = pneg %p123
        $region26: #{_lambda_.1} parent=11 // pred_check_branch
          %206 = sbr.rel (%p204) target = $region28
        $region27: #{_lambda_.1} parent=11 // pred_region
          _
        $region28: #{_lambda_.1} parent=11 // pred_fallthru
          _
        // Predicated region
        $region29: #{_lambda_.1} parent=11 // pred_check
          %p207 = pneg %p144
        $region30: #{_lambda_.1} parent=11 // pred_check_branch
          %209 = sbr.rel (%p207) target = $region32
        $region31: #{_lambda_.1} parent=11 // pred_region
          _
        $region32: #{_lambda_.1} parent=11 // pred_fallthru
          _
      $region12: #{_lambda_.1} parent=5 // pred_fallthru
        _
      %p210 = scmp.lt.s32.totalorder %s13, 2
      // Predicated region
      $region33: #{_lambda_.1} parent=5 // pred_check
        %p211 = pneg %p210
      $region34: #{_lambda_.1} parent=5 // pred_check_branch
        %213 = sbr.rel (%p211) target = $region36
      $region35: #{_lambda_.1} parent=5 // pred_region
        // Predicated region
        $region37: #{_lambda_.1} parent=35 // pred_check
          %p214 = pneg %p33
        $region38: #{_lambda_.1} parent=35 // pred_check_branch
          %216 = sbr.rel (%p214) target = $region40
        $region39: #{_lambda_.1} parent=35 // pred_region
          %p217 = scmp.lt.s32.totalorder %s13, 1
          %s218 = scalar_select %p217, %s13, 1
          %s219 = smul.addr %s218, 2
          %s220 = smul.addr %s219, 8
          %s221 = scalar_lea.vmem %s0, %s220
        $region40: #{_lambda_.1} parent=35 // pred_fallthru
          _
      $region36: #{_lambda_.1} parent=5 // pred_fallthru
        _
      %p222 = scmp.le.s32.totalorder 1, %s13
      %p223 = scmp.lt.s32.totalorder %s13, 3
      %p224 = pnand %p222, %p223
      %p225 = pneg %p224
      // Predicated region
      $region41: #{_lambda_.1} parent=5 // pred_check
        _
      $region42: #{_lambda_.1} parent=5 // pred_check_branch
        %227 = sbr.rel (%p224) target = $region44
      $region43: #{_lambda_.1} parent=5 // pred_region
        %s228 = ssub.s32 %s13, 1
        // Predicated region
        $region45: #{_lambda_.1} parent=43 // pred_check
          %p229 = pneg %p81
        $region46: #{_lambda_.1} parent=43 // pred_check_branch
          %231 = sbr.rel (%p229) target = $region48
        $region47: #{_lambda_.1} parent=43 // pred_region
          %232 = dma.done [#allocation3], 256
        $region48: #{_lambda_.1} parent=43 // pred_fallthru
          _
        %p233 = scmp.lt.s32.totalorder %s18, 1
        %s234 = scalar_select %p233, %s18, 1
        %s235 = smul.addr %s234, 2
        %s236 = smul.addr %s235, 8
        %s237 = scalar_lea.vmem %s0, %s236
        %p238 = pneg %p39
        %p239 = pneg %p36
        %p240 = pneg %p60
        %p241 = pneg %p57
        %p242 = pneg %p81
        %p243 = pneg %p78
        %p244 = pneg %p102
        %p245 = pneg %p99
        %p246 = pneg %p123
        %p247 = pneg %p120
        %p248 = pneg %p144
        %p249 = pneg %p141
        %p250 = pneg %p170
        %p251 = pneg %p167
        %p252 = scmp.lt.s32.totalorder %s18, 1
        %s253 = scalar_select %p252, %s18, 1
        %s254 = smul.addr %s253, 2
        %s255 = scalar_lea.vmem %s6, %s254
        %p256 = scmp.lt.s32.totalorder %s18, 1
        %s257 = scalar_select %p256, %s18, 1
        %s258 = smul.addr %s257, 2
        %s259 = smul.addr %s258, 8
        %s260 = scalar_lea.vmem %s0, %s259
        %p261 = scmp.lt.s32.totalorder %s18, 1
        %s262 = scalar_select %p261, %s18, 1
        %s263 = smul.addr %s262, 2
        %s264 = scalar_lea.vmem %s6, %s263
        %v265 = vld [vmem:[%s260] sm:$0xff]
        %v266 = vld [vmem:[%s260 + $0x8] sm:$0xff]
        %v267 = vcvt.f32.s32.to.zero.pseudo %v265
        %v268 = vcvt.f32.s32.to.zero.pseudo %v266
        %v269 = vcvt.s32.f32 %v267
        %v270 = vcvt.s32.f32 %v268
        %v271 = vlaneseq
        %v272 = vand.u32 %v271, 127
        %273 = vset.pattern.permute.xlu0 0
        %274 = vperm.xlu0 %273, %v267
        %v275 = vpop.permute.xlu0 %274
        %276 = vset.pattern.permute.xlu0 0
        %277 = vperm.xlu0 %276, %v268
        %v278 = vpop.permute.xlu0 %277
        %vm279 = vcmp.eq.s32.totalorder %v275, %v272
        %vm280 = vcmp.eq.s32.totalorder %v278, %v272
        %v281 = vsel %vm279, 1, 0
        %v282 = vsel %vm280, 1, 0
        %v283 = vcvt.s32.f32 %v281
        %v284 = vcvt.s32.f32 %v282
        %v285 = vld [vmem:[%s1] sm:$0xff]
        %vm286 = vcmp.eq.s32.totalorder %v272, 7
        %v287 = vsel %vm286, 1, 0
        %v288 = vcvt.s32.f32 %v287
        %290 = vset.pattern.permute.xlu0 1
        %291 = vperm.xlu0 %290, %v269
        %v292 = vpop.permute.xlu0 %291
        %295 = vset.pattern.permute.xlu0 1
        %296 = vperm.xlu0 %295, %v270
        %v297 = vpop.permute.xlu0 %296
        %v299 = vmul.f32 %v292, %v288
        %v300 = vmul.f32 %v297, %v288
        %vm301 = vcmask 64512
        %v303 = vsel %vm301, %v283, 0
        %v306 = vsel %vm301, %v284, 0
        %308 = vmatprep.subr.mxu0 0.0
        %309 = vmatpush1.msra.mxu0 0.0
        %310 = vmatprep.subr.mxu0 0.0
        %311 = vmatpush1.msra.mxu0 0.0
        %312 = vmatprep.subr.mxu0 0.0
        %313 = vmatpush1.msra.mxu0 0.0
        %314 = vmatprep.subr.mxu0 0.0
        %315 = vmatpush1.msra.mxu0 0.0
        %316 = vmatprep.subr.mxu0 0.0
        %317 = vmatpush1.msra.mxu0 0.0
        %318 = vmatprep.subr.mxu0 0.0
        %319 = vmatpush1.msra.mxu0 0.0
        %320 = vmatprep.subr.mxu0 0.0
        %321 = vmatpush1.msra.mxu0 0.0
        %322 = vmatprep.subr.mxu0 0.0
        %323 = vmatpush1.msra.mxu0 0.0
        %324 = vmatprep.subr.mxu0 0.0
        %325 = vmatpush1.msra.mxu0 0.0
        %326 = vmatprep.subr.mxu0 0.0
        %327 = vmatpush1.msra.mxu0 0.0
        %328 = vmatprep.subr.mxu0 0.0
        %329 = vmatpush1.msra.mxu0 0.0
        %330 = vmatprep.subr.mxu0 0.0
        %331 = vmatpush1.msra.mxu0 0.0
        %332 = vmatprep.subr.mxu0 0.0
        %333 = vmatpush1.msra.mxu0 0.0
        %334 = vmatprep.subr.mxu0 0.0
        %335 = vmatpush1.msra.mxu0 0.0
        %336 = vmatprep.subr.mxu0 0.0
        %337 = vmatpush1.msra.mxu0 0.0
        %338 = vmatprep.subr.mxu0 0.0
        %339 = vmatpush1.msra.mxu0 %v285
        %340 = vmatprep.subr.mxu0 0.0
        %341 = vmatpush2.msra.mxu0 0.0
        %342 = vmatprep.subr.mxu0 0.0
        %343 = vmatpush2.msra.mxu0 0.0
        %344 = vmatprep.subr.mxu0 0.0
        %345 = vmatpush2.msra.mxu0 0.0
        %346 = vmatprep.subr.mxu0 0.0
        %347 = vmatpush2.msra.mxu0 0.0
        %348 = vmatprep.subr.mxu0 0.0
        %349 = vmatpush2.msra.mxu0 0.0
        %350 = vmatprep.subr.mxu0 0.0
        %351 = vmatpush2.msra.mxu0 0.0
        %352 = vmatprep.subr.mxu0 0.0
        %353 = vmatpush2.msra.mxu0 0.0
        %354 = vmatprep.subr.mxu0 0.0
        %355 = vmatpush2.msra.mxu0 0.0
        %356 = vmatprep.subr.mxu0 0.0
        %357 = vmatpush2.msra.mxu0 0.0
        %358 = vmatprep.subr.mxu0 0.0
        %359 = vmatpush2.msra.mxu0 0.0
        %360 = vmatprep.subr.mxu0 0.0
        %361 = vmatpush2.msra.mxu0 0.0
        %362 = vmatprep.subr.mxu0 0.0
        %363 = vmatpush2.msra.mxu0 0.0
        %364 = vmatprep.subr.mxu0 0.0
        %365 = vmatpush2.msra.mxu0 0.0
        %366 = vmatprep.subr.mxu0 0.0
        %367 = vmatpush2.msra.mxu0 0.0
        %368 = vmatprep.subr.mxu0 0.0
        %369 = vmatpush2.msra.mxu0 0.0
        %370 = vmatprep.subr.mxu0 0.0
        %371 = vmatpush2.msra.mxu0 0.0
        %372 = vmatprep.mubr.f32.mxu0 0.0
        %373 = vmatmul.mubr.f32.gmra.mxu0 %v303
        %v374 = vpop.f32.mrf.mxu0
        %v375 = vadd.f32 %v299, %v374
        %v376 = vpop.f32.mrf.mxu0
        %377 = vmatprep.mubr.f32.mxu0 0.0
        %378 = vmatmul.mubr.f32.gmra.mxu0 %v306
        %v379 = vpop.f32.mrf.mxu0
        %v380 = vadd.f32 %v300, %v379
        %v381 = vpop.f32.mrf.mxu0
        %382 = vdwg.mxu0
        %v383 = vlaneseq
        %v384 = vshrl.u32 %v383, 7
        %v385 = vadd.s32 %v384, 8
        %v386 = vld [vmem:[%s3] sm:$0x1]
        %v387 = vmul.u32 %v384, 2
        %v388 = vmul.u32 %v385, 2
        %v389 = vadd.s32 %v387, 4294967295
        %v390 = vadd.s32 %v388, 4294967295
        %vm391 = vcmp.eq.s32.totalorder %v272, %v389
        %vm392 = vcmp.eq.s32.totalorder %v272, %v390
        %v393 = vsel %vm391, 1, 0
        %v394 = vsel %vm392, 1, 0
        %v395 = vcvt.s32.f32 %v393
        %v396 = vcvt.s32.f32 %v394
        %vm397 = vcmask 130048
        %v399 = vsel %vm397, %v395, 0
        %v402 = vsel %vm397, %v396, 0
        %404 = vmatprep.subr.mxu0 0.0
        %405 = vmatpush1.msra.mxu0 0.0
        %406 = vmatprep.subr.mxu0 0.0
        %407 = vmatpush1.msra.mxu0 0.0
        %408 = vmatprep.subr.mxu0 0.0
        %409 = vmatpush1.msra.mxu0 0.0
        %410 = vmatprep.subr.mxu0 0.0
        %411 = vmatpush1.msra.mxu0 0.0
        %412 = vmatprep.subr.mxu0 0.0
        %413 = vmatpush1.msra.mxu0 0.0
        %414 = vmatprep.subr.mxu0 0.0
        %415 = vmatpush1.msra.mxu0 0.0
        %416 = vmatprep.subr.mxu0 0.0
        %417 = vmatpush1.msra.mxu0 0.0
        %418 = vmatprep.subr.mxu0 0.0
        %419 = vmatpush1.msra.mxu0 0.0
        %420 = vmatprep.subr.mxu0 0.0
        %421 = vmatpush1.msra.mxu0 0.0
        %422 = vmatprep.subr.mxu0 0.0
        %423 = vmatpush1.msra.mxu0 0.0
        %424 = vmatprep.subr.mxu0 0.0
        %425 = vmatpush1.msra.mxu0 0.0
        %426 = vmatprep.subr.mxu0 0.0
        %427 = vmatpush1.msra.mxu0 0.0
        %428 = vmatprep.subr.mxu0 0.0
        %429 = vmatpush1.msra.mxu0 0.0
        %430 = vmatprep.subr.mxu0 0.0
        %431 = vmatpush1.msra.mxu0 0.0
        %432 = vmatprep.subr.mxu0 0.0
        %433 = vmatpush1.msra.mxu0 %v380
        %434 = vmatprep.subr.mxu0 0.0
        %435 = vmatpush1.msra.mxu0 %v375
        %436 = vmatprep.subr.mxu0 0.0
        %437 = vmatpush2.msra.mxu0 0.0
        %438 = vmatprep.subr.mxu0 0.0
        %439 = vmatpush2.msra.mxu0 0.0
        %440 = vmatprep.subr.mxu0 0.0
        %441 = vmatpush2.msra.mxu0 0.0
        %442 = vmatprep.subr.mxu0 0.0
        %443 = vmatpush2.msra.mxu0 0.0
        %444 = vmatprep.subr.mxu0 0.0
        %445 = vmatpush2.msra.mxu0 0.0
        %446 = vmatprep.subr.mxu0 0.0
        %447 = vmatpush2.msra.mxu0 0.0
        %448 = vmatprep.subr.mxu0 0.0
        %449 = vmatpush2.msra.mxu0 0.0
        %450 = vmatprep.subr.mxu0 0.0
        %451 = vmatpush2.msra.mxu0 0.0
        %452 = vmatprep.subr.mxu0 0.0
        %453 = vmatpush2.msra.mxu0 0.0
        %454 = vmatprep.subr.mxu0 0.0
        %455 = vmatpush2.msra.mxu0 0.0
        %456 = vmatprep.subr.mxu0 0.0
        %457 = vmatpush2.msra.mxu0 0.0
        %458 = vmatprep.subr.mxu0 0.0
        %459 = vmatpush2.msra.mxu0 0.0
        %460 = vmatprep.subr.mxu0 0.0
        %461 = vmatpush2.msra.mxu0 0.0
        %462 = vmatprep.subr.mxu0 0.0
        %463 = vmatpush2.msra.mxu0 0.0
        %464 = vmatprep.subr.mxu0 0.0
        %465 = vmatpush2.msra.mxu0 0.0
        %466 = vmatprep.subr.mxu0 0.0
        %467 = vmatpush2.msra.mxu0 0.0
        %468 = vmatprep.mubr.f32.mxu0 0.0
        %469 = vmatmul.mubr.f32.gmra.mxu0 %v399
        %v470 = vpop.f32.mrf.mxu0
        %v471 = vadd.f32 0.0, %v470
        %v472 = vpop.f32.mrf.mxu0
        %473 = vmatprep.mubr.f32.mxu0 0.0
        %474 = vmatmul.mubr.f32.gmra.mxu0 %v402
        %v475 = vpop.f32.mrf.mxu0
        %v476 = vadd.f32 0.0, %v475
        %v477 = vpop.f32.mrf.mxu0
        %478 = vdwg.mxu0
        %v479 = vld [vmem:[#allocation2] sm:$0xff]
        %v481 = vsel %vm301, %v471, 0
        %v484 = vsel %vm301, %v476, 0
        %486 = vmatprep.subr.mxu0 0.0
        %487 = vmatpush1.msra.mxu0 0.0
        %488 = vmatprep.subr.mxu0 0.0
        %489 = vmatpush1.msra.mxu0 0.0
        %490 = vmatprep.subr.mxu0 0.0
        %491 = vmatpush1.msra.mxu0 0.0
        %492 = vmatprep.subr.mxu0 0.0
        %493 = vmatpush1.msra.mxu0 0.0
        %494 = vmatprep.subr.mxu0 0.0
        %495 = vmatpush1.msra.mxu0 0.0
        %496 = vmatprep.subr.mxu0 0.0
        %497 = vmatpush1.msra.mxu0 0.0
        %498 = vmatprep.subr.mxu0 0.0
        %499 = vmatpush1.msra.mxu0 0.0
        %500 = vmatprep.subr.mxu0 0.0
        %501 = vmatpush1.msra.mxu0 0.0
        %502 = vmatprep.subr.mxu0 0.0
        %503 = vmatpush1.msra.mxu0 0.0
        %504 = vmatprep.subr.mxu0 0.0
        %505 = vmatpush1.msra.mxu0 0.0
        %506 = vmatprep.subr.mxu0 0.0
        %507 = vmatpush1.msra.mxu0 0.0
        %508 = vmatprep.subr.mxu0 0.0
        %509 = vmatpush1.msra.mxu0 0.0
        %510 = vmatprep.subr.mxu0 0.0
        %511 = vmatpush1.msra.mxu0 0.0
        %512 = vmatprep.subr.mxu0 0.0
        %513 = vmatpush1.msra.mxu0 0.0
        %514 = vmatprep.subr.mxu0 0.0
        %515 = vmatpush1.msra.mxu0 0.0
        %516 = vmatprep.subr.mxu0 0.0
        %517 = vmatpush1.msra.mxu0 %v479
        %518 = vmatprep.subr.mxu0 0.0
        %519 = vmatpush2.msra.mxu0 0.0
        %520 = vmatprep.subr.mxu0 0.0
        %521 = vmatpush2.msra.mxu0 0.0
        %522 = vmatprep.subr.mxu0 0.0
        %523 = vmatpush2.msra.mxu0 0.0
        %524 = vmatprep.subr.mxu0 0.0
        %525 = vmatpush2.msra.mxu0 0.0
        %526 = vmatprep.subr.mxu0 0.0
        %527 = vmatpush2.msra.mxu0 0.0
        %528 = vmatprep.subr.mxu0 0.0
        %529 = vmatpush2.msra.mxu0 0.0
        %530 = vmatprep.subr.mxu0 0.0
        %531 = vmatpush2.msra.mxu0 0.0
        %532 = vmatprep.subr.mxu0 0.0
        %533 = vmatpush2.msra.mxu0 0.0
        %534 = vmatprep.subr.mxu0 0.0
        %535 = vmatpush2.msra.mxu0 0.0
        %536 = vmatprep.subr.mxu0 0.0
        %537 = vmatpush2.msra.mxu0 0.0
        %538 = vmatprep.subr.mxu0 0.0
        %539 = vmatpush2.msra.mxu0 0.0
        %540 = vmatprep.subr.mxu0 0.0
        %541 = vmatpush2.msra.mxu0 0.0
        %542 = vmatprep.subr.mxu0 0.0
        %543 = vmatpush2.msra.mxu0 0.0
        %544 = vmatprep.subr.mxu0 0.0
        %545 = vmatpush2.msra.mxu0 0.0
        %546 = vmatprep.subr.mxu0 0.0
        %547 = vmatpush2.msra.mxu0 0.0
        %548 = vmatprep.subr.mxu0 0.0
        %549 = vmatpush2.msra.mxu0 0.0
        %550 = vmatprep.mubr.f32.mxu0 0.0
        %551 = vmatmul.mubr.f32.gmra.mxu0 %v481
        %v552 = vpop.f32.mrf.mxu0
        %v553 = vadd.f32 0.0, %v552
        %v554 = vpop.f32.mrf.mxu0
        %555 = vmatprep.mubr.f32.mxu0 0.0
        %556 = vmatmul.mubr.f32.gmra.mxu0 %v484
        %v557 = vpop.f32.mrf.mxu0
        %v558 = vadd.f32 0.0, %v557
        %v559 = vpop.f32.mrf.mxu0
        %560 = vdwg.mxu0
        %v562 = vlaneseq
        %v563 = vshrl.u32 %v562, 7
        %v564 = vsub.s32 0, %v563
        %v565 = vrot.slane %v386, %v564
        %v567 = vadd.f32 %v565, %v553
        %v568 = vadd.f32 %v565, %v558
        %vm569 = vcmp.eq.s32.totalorder %v272, %v387
        %vm570 = vcmp.eq.s32.totalorder %v272, %v388
        %v571 = vsel %vm569, 1, 0
        %v572 = vsel %vm570, 1, 0
        %v573 = vcvt.s32.f32 %v571
        %v574 = vcvt.s32.f32 %v572
        %v576 = vsel %vm397, %v573, 0
        %v579 = vsel %vm397, %v574, 0
        %581 = vmatprep.subr.mxu0 0.0
        %582 = vmatpush1.msra.mxu0 0.0
        %583 = vmatprep.subr.mxu0 0.0
        %584 = vmatpush1.msra.mxu0 0.0
        %585 = vmatprep.subr.mxu0 0.0
        %586 = vmatpush1.msra.mxu0 0.0
        %587 = vmatprep.subr.mxu0 0.0
        %588 = vmatpush1.msra.mxu0 0.0
        %589 = vmatprep.subr.mxu0 0.0
        %590 = vmatpush1.msra.mxu0 0.0
        %591 = vmatprep.subr.mxu0 0.0
        %592 = vmatpush1.msra.mxu0 0.0
        %593 = vmatprep.subr.mxu0 0.0
        %594 = vmatpush1.msra.mxu0 0.0
        %595 = vmatprep.subr.mxu0 0.0
        %596 = vmatpush1.msra.mxu0 0.0
        %597 = vmatprep.subr.mxu0 0.0
        %598 = vmatpush1.msra.mxu0 0.0
        %599 = vmatprep.subr.mxu0 0.0
        %600 = vmatpush1.msra.mxu0 0.0
        %601 = vmatprep.subr.mxu0 0.0
        %602 = vmatpush1.msra.mxu0 0.0
        %603 = vmatprep.subr.mxu0 0.0
        %604 = vmatpush1.msra.mxu0 0.0
        %605 = vmatprep.subr.mxu0 0.0
        %606 = vmatpush1.msra.mxu0 0.0
        %607 = vmatprep.subr.mxu0 0.0
        %608 = vmatpush1.msra.mxu0 0.0
        %609 = vmatprep.subr.mxu0 0.0
        %610 = vmatpush1.msra.mxu0 %v380
        %611 = vmatprep.subr.mxu0 0.0
        %612 = vmatpush1.msra.mxu0 %v375
        %613 = vmatprep.subr.mxu0 0.0
        %614 = vmatpush2.msra.mxu0 0.0
        %615 = vmatprep.subr.mxu0 0.0
        %616 = vmatpush2.msra.mxu0 0.0
        %617 = vmatprep.subr.mxu0 0.0
        %618 = vmatpush2.msra.mxu0 0.0
        %619 = vmatprep.subr.mxu0 0.0
        %620 = vmatpush2.msra.mxu0 0.0
        %621 = vmatprep.subr.mxu0 0.0
        %622 = vmatpush2.msra.mxu0 0.0
        %623 = vmatprep.subr.mxu0 0.0
        %624 = vmatpush2.msra.mxu0 0.0
        %625 = vmatprep.subr.mxu0 0.0
        %626 = vmatpush2.msra.mxu0 0.0
        %627 = vmatprep.subr.mxu0 0.0
        %628 = vmatpush2.msra.mxu0 0.0
        %629 = vmatprep.subr.mxu0 0.0
        %630 = vmatpush2.msra.mxu0 0.0
        %631 = vmatprep.subr.mxu0 0.0
        %632 = vmatpush2.msra.mxu0 0.0
        %633 = vmatprep.subr.mxu0 0.0
        %634 = vmatpush2.msra.mxu0 0.0
        %635 = vmatprep.subr.mxu0 0.0
        %636 = vmatpush2.msra.mxu0 0.0
        %637 = vmatprep.subr.mxu0 0.0
        %638 = vmatpush2.msra.mxu0 0.0
        %639 = vmatprep.subr.mxu0 0.0
        %640 = vmatpush2.msra.mxu0 0.0
        %641 = vmatprep.subr.mxu0 0.0
        %642 = vmatpush2.msra.mxu0 0.0
        %643 = vmatprep.subr.mxu0 0.0
        %644 = vmatpush2.msra.mxu0 0.0
        %645 = vmatprep.mubr.f32.mxu0 0.0
        %646 = vmatmul.mubr.f32.gmra.mxu0 %v576
        %v647 = vpop.f32.mrf.mxu0
        %v648 = vadd.f32 0.0, %v647
        %v649 = vpop.f32.mrf.mxu0
        %650 = vmatprep.mubr.f32.mxu0 0.0
        %651 = vmatmul.mubr.f32.gmra.mxu0 %v579
        %v652 = vpop.f32.mrf.mxu0
        %v653 = vadd.f32 0.0, %v652
        %v654 = vpop.f32.mrf.mxu0
        %655 = vdwg.mxu0
        %s656 = scalar_lea.vmem [#allocation2], 8
        %v657 = vld [vmem:[%s656] sm:$0xff]
        %v659 = vsel %vm301, %v648, 0
        %v662 = vsel %vm301, %v653, 0
        %664 = vmatprep.subr.mxu0 0.0
        %665 = vmatpush1.msra.mxu0 0.0
        %666 = vmatprep.subr.mxu0 0.0
        %667 = vmatpush1.msra.mxu0 0.0
        %668 = vmatprep.subr.mxu0 0.0
        %669 = vmatpush1.msra.mxu0 0.0
        %670 = vmatprep.subr.mxu0 0.0
        %671 = vmatpush1.msra.mxu0 0.0
        %672 = vmatprep.subr.mxu0 0.0
        %673 = vmatpush1.msra.mxu0 0.0
        %674 = vmatprep.subr.mxu0 0.0
        %675 = vmatpush1.msra.mxu0 0.0
        %676 = vmatprep.subr.mxu0 0.0
        %677 = vmatpush1.msra.mxu0 0.0
        %678 = vmatprep.subr.mxu0 0.0
        %679 = vmatpush1.msra.mxu0 0.0
        %680 = vmatprep.subr.mxu0 0.0
        %681 = vmatpush1.msra.mxu0 0.0
        %682 = vmatprep.subr.mxu0 0.0
        %683 = vmatpush1.msra.mxu0 0.0
        %684 = vmatprep.subr.mxu0 0.0
        %685 = vmatpush1.msra.mxu0 0.0
        %686 = vmatprep.subr.mxu0 0.0
        %687 = vmatpush1.msra.mxu0 0.0
        %688 = vmatprep.subr.mxu0 0.0
        %689 = vmatpush1.msra.mxu0 0.0
        %690 = vmatprep.subr.mxu0 0.0
        %691 = vmatpush1.msra.mxu0 0.0
        %692 = vmatprep.subr.mxu0 0.0
        %693 = vmatpush1.msra.mxu0 0.0
        %694 = vmatprep.subr.mxu0 0.0
        %695 = vmatpush1.msra.mxu0 %v657
        %696 = vmatprep.subr.mxu0 0.0
        %697 = vmatpush2.msra.mxu0 0.0
        %698 = vmatprep.subr.mxu0 0.0
        %699 = vmatpush2.msra.mxu0 0.0
        %700 = vmatprep.subr.mxu0 0.0
        %701 = vmatpush2.msra.mxu0 0.0
        %702 = vmatprep.subr.mxu0 0.0
        %703 = vmatpush2.msra.mxu0 0.0
        %704 = vmatprep.subr.mxu0 0.0
        %705 = vmatpush2.msra.mxu0 0.0
        %706 = vmatprep.subr.mxu0 0.0
        %707 = vmatpush2.msra.mxu0 0.0
        %708 = vmatprep.subr.mxu0 0.0
        %709 = vmatpush2.msra.mxu0 0.0
        %710 = vmatprep.subr.mxu0 0.0
        %711 = vmatpush2.msra.mxu0 0.0
        %712 = vmatprep.subr.mxu0 0.0
        %713 = vmatpush2.msra.mxu0 0.0
        %714 = vmatprep.subr.mxu0 0.0
        %715 = vmatpush2.msra.mxu0 0.0
        %716 = vmatprep.subr.mxu0 0.0
        %717 = vmatpush2.msra.mxu0 0.0
        %718 = vmatprep.subr.mxu0 0.0
        %719 = vmatpush2.msra.mxu0 0.0
        %720 = vmatprep.subr.mxu0 0.0
        %721 = vmatpush2.msra.mxu0 0.0
        %722 = vmatprep.subr.mxu0 0.0
        %723 = vmatpush2.msra.mxu0 0.0
        %724 = vmatprep.subr.mxu0 0.0
        %725 = vmatpush2.msra.mxu0 0.0
        %726 = vmatprep.subr.mxu0 0.0
        %727 = vmatpush2.msra.mxu0 0.0
        %728 = vmatprep.mubr.f32.mxu0 0.0
        %729 = vmatmul.mubr.f32.gmra.mxu0 %v659
        %v730 = vpop.f32.mrf.mxu0
        %v731 = vadd.f32 0.0, %v730
        %v732 = vpop.f32.mrf.mxu0
        %733 = vmatprep.mubr.f32.mxu0 0.0
        %734 = vmatmul.mubr.f32.gmra.mxu0 %v662
        %v735 = vpop.f32.mrf.mxu0
        %v736 = vadd.f32 0.0, %v735
        %v737 = vpop.f32.mrf.mxu0
        %738 = vdwg.mxu0
        %v739 = vadd.f32 %v567, %v731
        %v740 = vadd.f32 %v568, %v736
        %vm741 = vcmp.ge.f32.partialorder %v739, 0.0
        %vm742 = vcmp.ge.f32.partialorder %v740, 0.0
        %v743 = vmul.f32 %v739, 0.01
        %v744 = vmul.f32 %v740, 0.01
        %v745 = vsel %vm741, %v739, %v743
        %v746 = vsel %vm742, %v740, %v744
        %v747 = vld [vmem:[%s5] sm:$0x1]
        %vm748 = vcmask 72704
        %v749 = vsel %vm748, %v395, 0
        %vm751 = vcmask 1040384
        %v753 = vsel %vm751, %v746, 0
        %755 = vmatprep.subr.mxu0 0.0
        %756 = vmatpush1.msra.mxu0 0.0
        %757 = vmatprep.subr.mxu0 0.0
        %758 = vmatpush1.msra.mxu0 0.0
        %759 = vmatprep.subr.mxu0 0.0
        %760 = vmatpush1.msra.mxu0 0.0
        %761 = vmatprep.subr.mxu0 0.0
        %762 = vmatpush1.msra.mxu0 0.0
        %763 = vmatprep.subr.mxu0 0.0
        %764 = vmatpush1.msra.mxu0 0.0
        %765 = vmatprep.subr.mxu0 0.0
        %766 = vmatpush1.msra.mxu0 0.0
        %767 = vmatprep.subr.mxu0 0.0
        %768 = vmatpush1.msra.mxu0 0.0
        %769 = vmatprep.subr.mxu0 0.0
        %770 = vmatpush1.msra.mxu0 0.0
        %771 = vmatprep.subr.mxu0 0.0
        %772 = vmatpush1.msra.mxu0 0.0
        %773 = vmatprep.subr.mxu0 0.0
        %774 = vmatpush1.msra.mxu0 0.0
        %775 = vmatprep.subr.mxu0 0.0
        %776 = vmatpush1.msra.mxu0 0.0
        %777 = vmatprep.subr.mxu0 0.0
        %778 = vmatpush1.msra.mxu0 0.0
        %779 = vmatprep.subr.mxu0 0.0
        %780 = vmatpush1.msra.mxu0 0.0
        %781 = vmatprep.subr.mxu0 0.0
        %782 = vmatpush1.msra.mxu0 0.0
        %783 = vmatprep.subr.mxu0 0.0
        %784 = vmatpush1.msra.mxu0 %v753
        %785 = vmatprep.subr.mxu0 0.0
        %786 = vmatpush1.msra.mxu0 %v745
        %787 = vmatprep.subr.mxu0 0.0
        %788 = vmatpush2.msra.mxu0 0.0
        %789 = vmatprep.subr.mxu0 0.0
        %790 = vmatpush2.msra.mxu0 0.0
        %791 = vmatprep.subr.mxu0 0.0
        %792 = vmatpush2.msra.mxu0 0.0
        %793 = vmatprep.subr.mxu0 0.0
        %794 = vmatpush2.msra.mxu0 0.0
        %795 = vmatprep.subr.mxu0 0.0
        %796 = vmatpush2.msra.mxu0 0.0
        %797 = vmatprep.subr.mxu0 0.0
        %798 = vmatpush2.msra.mxu0 0.0
        %799 = vmatprep.subr.mxu0 0.0
        %800 = vmatpush2.msra.mxu0 0.0
        %801 = vmatprep.subr.mxu0 0.0
        %802 = vmatpush2.msra.mxu0 0.0
        %803 = vmatprep.subr.mxu0 0.0
        %804 = vmatpush2.msra.mxu0 0.0
        %805 = vmatprep.subr.mxu0 0.0
        %806 = vmatpush2.msra.mxu0 0.0
        %807 = vmatprep.subr.mxu0 0.0
        %808 = vmatpush2.msra.mxu0 0.0
        %809 = vmatprep.subr.mxu0 0.0
        %810 = vmatpush2.msra.mxu0 0.0
        %811 = vmatprep.subr.mxu0 0.0
        %812 = vmatpush2.msra.mxu0 0.0
        %813 = vmatprep.subr.mxu0 0.0
        %814 = vmatpush2.msra.mxu0 0.0
        %815 = vmatprep.subr.mxu0 0.0
        %816 = vmatpush2.msra.mxu0 0.0
        %817 = vmatprep.subr.mxu0 0.0
        %818 = vmatpush2.msra.mxu0 0.0
        %819 = vmatprep.mubr.f32.mxu0 0.0
        %820 = vmatmul.mubr.f32.gmra.mxu0 %v749
        %v821 = vpop.f32.mrf.mxu0
        %v822 = vadd.f32 0.0, %v821
        %v823 = vpop.f32.mrf.mxu0
        %824 = vdwg.mxu0
        %v825 = vld [vmem:[%s4] sm:$0xff]
        %v826 = vld [vmem:[%s4 + $0x8] sm:$0xff]
        %v828 = vsel %vm397, %v822, 0
        %830 = vmatprep.subr.mxu0 0.0
        %831 = vmatpush1.msra.mxu0 0.0
        %832 = vmatprep.subr.mxu0 0.0
        %833 = vmatpush1.msra.mxu0 0.0
        %834 = vmatprep.subr.mxu0 0.0
        %835 = vmatpush1.msra.mxu0 0.0
        %836 = vmatprep.subr.mxu0 0.0
        %837 = vmatpush1.msra.mxu0 0.0
        %838 = vmatprep.subr.mxu0 0.0
        %839 = vmatpush1.msra.mxu0 0.0
        %840 = vmatprep.subr.mxu0 0.0
        %841 = vmatpush1.msra.mxu0 0.0
        %842 = vmatprep.subr.mxu0 0.0
        %843 = vmatpush1.msra.mxu0 0.0
        %844 = vmatprep.subr.mxu0 0.0
        %845 = vmatpush1.msra.mxu0 0.0
        %846 = vmatprep.subr.mxu0 0.0
        %847 = vmatpush1.msra.mxu0 0.0
        %848 = vmatprep.subr.mxu0 0.0
        %849 = vmatpush1.msra.mxu0 0.0
        %850 = vmatprep.subr.mxu0 0.0
        %851 = vmatpush1.msra.mxu0 0.0
        %852 = vmatprep.subr.mxu0 0.0
        %853 = vmatpush1.msra.mxu0 0.0
        %854 = vmatprep.subr.mxu0 0.0
        %855 = vmatpush1.msra.mxu0 0.0
        %856 = vmatprep.subr.mxu0 0.0
        %857 = vmatpush1.msra.mxu0 0.0
        %858 = vmatprep.subr.mxu0 0.0
        %859 = vmatpush1.msra.mxu0 %v826
        %860 = vmatprep.subr.mxu0 0.0
        %861 = vmatpush1.msra.mxu0 %v825
        %862 = vmatprep.subr.mxu0 0.0
        %863 = vmatpush2.msra.mxu0 0.0
        %864 = vmatprep.subr.mxu0 0.0
        %865 = vmatpush2.msra.mxu0 0.0
        %866 = vmatprep.subr.mxu0 0.0
        %867 = vmatpush2.msra.mxu0 0.0
        %868 = vmatprep.subr.mxu0 0.0
        %869 = vmatpush2.msra.mxu0 0.0
        %870 = vmatprep.subr.mxu0 0.0
        %871 = vmatpush2.msra.mxu0 0.0
        %872 = vmatprep.subr.mxu0 0.0
        %873 = vmatpush2.msra.mxu0 0.0
        %874 = vmatprep.subr.mxu0 0.0
        %875 = vmatpush2.msra.mxu0 0.0
        %876 = vmatprep.subr.mxu0 0.0
        %877 = vmatpush2.msra.mxu0 0.0
        %878 = vmatprep.subr.mxu0 0.0
        %879 = vmatpush2.msra.mxu0 0.0
        %880 = vmatprep.subr.mxu0 0.0
        %881 = vmatpush2.msra.mxu0 0.0
        %882 = vmatprep.subr.mxu0 0.0
        %883 = vmatpush2.msra.mxu0 0.0
        %884 = vmatprep.subr.mxu0 0.0
        %885 = vmatpush2.msra.mxu0 0.0
        %886 = vmatprep.subr.mxu0 0.0
        %887 = vmatpush2.msra.mxu0 0.0
        %888 = vmatprep.subr.mxu0 0.0
        %889 = vmatpush2.msra.mxu0 0.0
        %890 = vmatprep.subr.mxu0 0.0
        %891 = vmatpush2.msra.mxu0 0.0
        %892 = vmatprep.subr.mxu0 0.0
        %893 = vmatpush2.msra.mxu0 0.0
        %894 = vmatprep.mubr.f32.mxu0 0.0
        %895 = vmatmul.mubr.f32.gmra.mxu0 %v828
        %v896 = vpop.f32.mrf.mxu0
        %v897 = vadd.f32 0.0, %v896
        %v898 = vpop.f32.mrf.mxu0
        %899 = vdwg.mxu0
        %v901 = vlaneseq
        %v902 = vshrl.u32 %v901, 7
        %v903 = vsub.s32 0, %v902
        %v904 = vrot.slane %v747, %v903
        %v906 = vadd.f32 %v904, %v897
        %v907 = vsel %vm748, %v573, 0
        %909 = vmatprep.subr.mxu0 0.0
        %910 = vmatpush1.msra.mxu0 0.0
        %911 = vmatprep.subr.mxu0 0.0
        %912 = vmatpush1.msra.mxu0 0.0
        %913 = vmatprep.subr.mxu0 0.0
        %914 = vmatpush1.msra.mxu0 0.0
        %915 = vmatprep.subr.mxu0 0.0
        %916 = vmatpush1.msra.mxu0 0.0
        %917 = vmatprep.subr.mxu0 0.0
        %918 = vmatpush1.msra.mxu0 0.0
        %919 = vmatprep.subr.mxu0 0.0
        %920 = vmatpush1.msra.mxu0 0.0
        %921 = vmatprep.subr.mxu0 0.0
        %922 = vmatpush1.msra.mxu0 0.0
        %923 = vmatprep.subr.mxu0 0.0
        %924 = vmatpush1.msra.mxu0 0.0
        %925 = vmatprep.subr.mxu0 0.0
        %926 = vmatpush1.msra.mxu0 0.0
        %927 = vmatprep.subr.mxu0 0.0
        %928 = vmatpush1.msra.mxu0 0.0
        %929 = vmatprep.subr.mxu0 0.0
        %930 = vmatpush1.msra.mxu0 0.0
        %931 = vmatprep.subr.mxu0 0.0
        %932 = vmatpush1.msra.mxu0 0.0
        %933 = vmatprep.subr.mxu0 0.0
        %934 = vmatpush1.msra.mxu0 0.0
        %935 = vmatprep.subr.mxu0 0.0
        %936 = vmatpush1.msra.mxu0 0.0
        %937 = vmatprep.subr.mxu0 0.0
        %938 = vmatpush1.msra.mxu0 %v753
        %939 = vmatprep.subr.mxu0 0.0
        %940 = vmatpush1.msra.mxu0 %v745
        %941 = vmatprep.subr.mxu0 0.0
        %942 = vmatpush2.msra.mxu0 0.0
        %943 = vmatprep.subr.mxu0 0.0
        %944 = vmatpush2.msra.mxu0 0.0
        %945 = vmatprep.subr.mxu0 0.0
        %946 = vmatpush2.msra.mxu0 0.0
        %947 = vmatprep.subr.mxu0 0.0
        %948 = vmatpush2.msra.mxu0 0.0
        %949 = vmatprep.subr.mxu0 0.0
        %950 = vmatpush2.msra.mxu0 0.0
        %951 = vmatprep.subr.mxu0 0.0
        %952 = vmatpush2.msra.mxu0 0.0
        %953 = vmatprep.subr.mxu0 0.0
        %954 = vmatpush2.msra.mxu0 0.0
        %955 = vmatprep.subr.mxu0 0.0
        %956 = vmatpush2.msra.mxu0 0.0
        %957 = vmatprep.subr.mxu0 0.0
        %958 = vmatpush2.msra.mxu0 0.0
        %959 = vmatprep.subr.mxu0 0.0
        %960 = vmatpush2.msra.mxu0 0.0
        %961 = vmatprep.subr.mxu0 0.0
        %962 = vmatpush2.msra.mxu0 0.0
        %963 = vmatprep.subr.mxu0 0.0
        %964 = vmatpush2.msra.mxu0 0.0
        %965 = vmatprep.subr.mxu0 0.0
        %966 = vmatpush2.msra.mxu0 0.0
        %967 = vmatprep.subr.mxu0 0.0
        %968 = vmatpush2.msra.mxu0 0.0
        %969 = vmatprep.subr.mxu0 0.0
        %970 = vmatpush2.msra.mxu0 0.0
        %971 = vmatprep.subr.mxu0 0.0
        %972 = vmatpush2.msra.mxu0 0.0
        %973 = vmatprep.mubr.f32.mxu0 0.0
        %974 = vmatmul.mubr.f32.gmra.mxu0 %v907
        %v975 = vpop.f32.mrf.mxu0
        %v976 = vadd.f32 0.0, %v975
        %v977 = vpop.f32.mrf.mxu0
        %978 = vdwg.mxu0
        %s979 = scalar_lea.vmem %s4, 16
        %v980 = vld [vmem:[%s979] sm:$0xff]
        %v981 = vld [vmem:[%s979 + $0x8] sm:$0xff]
        %v983 = vsel %vm397, %v976, 0
        %985 = vmatprep.subr.mxu0 0.0
        %986 = vmatpush1.msra.mxu0 0.0
        %987 = vmatprep.subr.mxu0 0.0
        %988 = vmatpush1.msra.mxu0 0.0
        %989 = vmatprep.subr.mxu0 0.0
        %990 = vmatpush1.msra.mxu0 0.0
        %991 = vmatprep.subr.mxu0 0.0
        %992 = vmatpush1.msra.mxu0 0.0
        %993 = vmatprep.subr.mxu0 0.0
        %994 = vmatpush1.msra.mxu0 0.0
        %995 = vmatprep.subr.mxu0 0.0
        %996 = vmatpush1.msra.mxu0 0.0
        %997 = vmatprep.subr.mxu0 0.0
        %998 = vmatpush1.msra.mxu0 0.0
        %999 = vmatprep.subr.mxu0 0.0
        %1000 = vmatpush1.msra.mxu0 0.0
        %1001 = vmatprep.subr.mxu0 0.0
        %1002 = vmatpush1.msra.mxu0 0.0
        %1003 = vmatprep.subr.mxu0 0.0
        %1004 = vmatpush1.msra.mxu0 0.0
        %1005 = vmatprep.subr.mxu0 0.0
        %1006 = vmatpush1.msra.mxu0 0.0
        %1007 = vmatprep.subr.mxu0 0.0
        %1008 = vmatpush1.msra.mxu0 0.0
        %1009 = vmatprep.subr.mxu0 0.0
        %1010 = vmatpush1.msra.mxu0 0.0
        %1011 = vmatprep.subr.mxu0 0.0
        %1012 = vmatpush1.msra.mxu0 0.0
        %1013 = vmatprep.subr.mxu0 0.0
        %1014 = vmatpush1.msra.mxu0 %v981
        %1015 = vmatprep.subr.mxu0 0.0
        %1016 = vmatpush1.msra.mxu0 %v980
        %1017 = vmatprep.subr.mxu0 0.0
        %1018 = vmatpush2.msra.mxu0 0.0
        %1019 = vmatprep.subr.mxu0 0.0
        %1020 = vmatpush2.msra.mxu0 0.0
        %1021 = vmatprep.subr.mxu0 0.0
        %1022 = vmatpush2.msra.mxu0 0.0
        %1023 = vmatprep.subr.mxu0 0.0
        %1024 = vmatpush2.msra.mxu0 0.0
        %1025 = vmatprep.subr.mxu0 0.0
        %1026 = vmatpush2.msra.mxu0 0.0
        %1027 = vmatprep.subr.mxu0 0.0
        %1028 = vmatpush2.msra.mxu0 0.0
        %1029 = vmatprep.subr.mxu0 0.0
        %1030 = vmatpush2.msra.mxu0 0.0
        %1031 = vmatprep.subr.mxu0 0.0
        %1032 = vmatpush2.msra.mxu0 0.0
        %1033 = vmatprep.subr.mxu0 0.0
        %1034 = vmatpush2.msra.mxu0 0.0
        %1035 = vmatprep.subr.mxu0 0.0
        %1036 = vmatpush2.msra.mxu0 0.0
        %1037 = vmatprep.subr.mxu0 0.0
        %1038 = vmatpush2.msra.mxu0 0.0
        %1039 = vmatprep.subr.mxu0 0.0
        %1040 = vmatpush2.msra.mxu0 0.0
        %1041 = vmatprep.subr.mxu0 0.0
        %1042 = vmatpush2.msra.mxu0 0.0
        %1043 = vmatprep.subr.mxu0 0.0
        %1044 = vmatpush2.msra.mxu0 0.0
        %1045 = vmatprep.subr.mxu0 0.0
        %1046 = vmatpush2.msra.mxu0 0.0
        %1047 = vmatprep.subr.mxu0 0.0
        %1048 = vmatpush2.msra.mxu0 0.0
        %1049 = vmatprep.mubr.f32.mxu0 0.0
        %1050 = vmatmul.mubr.f32.gmra.mxu0 %v983
        %v1051 = vpop.f32.mrf.mxu0
        %v1052 = vadd.f32 0.0, %v1051
        %v1053 = vpop.f32.mrf.mxu0
        %1054 = vdwg.mxu0
        %v1055 = vadd.f32 %v906, %v1052
        %vm1056 = vcmp.ge.f32.partialorder %v1055, 0.0
        %v1057 = vmul.f32 %v1055, 0.01
        %v1058 = vsel %vm1056, %v1055, %v1057
        %v1059 = vadd.s32 %v384, 16
        %v1060 = vadd.s32 %v384, 24
        %v1061 = vadd.s32 %v272, 128
        %v1062 = vmul.u32 %v384, 5
        %v1063 = vmul.u32 %v385, 5
        %v1064 = vmul.u32 %v1059, 5
        %v1065 = vmul.u32 %v1060, 5
        %vm1066 = vcmp.eq.s32.totalorder %v272, %v1062
        %vm1067 = vcmp.eq.s32.totalorder %v1061, %v1062
        %vm1068 = vcmp.eq.s32.totalorder %v272, %v1063
        %vm1069 = vcmp.eq.s32.totalorder %v1061, %v1063
        %vm1070 = vcmp.eq.s32.totalorder %v272, %v1064
        %vm1071 = vcmp.eq.s32.totalorder %v1061, %v1064
        %vm1072 = vcmp.eq.s32.totalorder %v272, %v1065
        %vm1073 = vcmp.eq.s32.totalorder %v1061, %v1065
        %v1074 = vsel %vm1066, 1, 0
        %v1075 = vsel %vm1067, 1, 0
        %v1076 = vsel %vm1068, 1, 0
        %v1077 = vsel %vm1069, 1, 0
        %v1078 = vsel %vm1070, 1, 0
        %v1079 = vsel %vm1071, 1, 0
        %v1080 = vsel %vm1072, 1, 0
        %v1081 = vsel %vm1073, 1, 0
        %v1082 = vcvt.s32.f32 %v1074
        %v1083 = vcvt.s32.f32 %v1075
        %v1084 = vcvt.s32.f32 %v1076
        %v1085 = vcvt.s32.f32 %v1077
        %v1086 = vcvt.s32.f32 %v1078
        %v1087 = vcvt.s32.f32 %v1079
        %v1088 = vcvt.s32.f32 %v1080
        %v1089 = vcvt.s32.f32 %v1081
        %v1090 = vadd.s32 %v1062, 1
        %v1091 = vadd.s32 %v1063, 1
        %v1092 = vadd.s32 %v1064, 1
        %v1093 = vadd.s32 %v1065, 1
        %vm1094 = vcmp.eq.s32.totalorder %v272, %v1090
        %vm1095 = vcmp.eq.s32.totalorder %v1061, %v1090
        %vm1096 = vcmp.eq.s32.totalorder %v272, %v1091
        %vm1097 = vcmp.eq.s32.totalorder %v1061, %v1091
        %vm1098 = vcmp.eq.s32.totalorder %v272, %v1092
        %vm1099 = vcmp.eq.s32.totalorder %v1061, %v1092
        %vm1100 = vcmp.eq.s32.totalorder %v272, %v1093
        %vm1101 = vcmp.eq.s32.totalorder %v1061, %v1093
        %v1102 = vsel %vm1094, 1, 0
        %v1103 = vsel %vm1095, 1, 0
        %v1104 = vsel %vm1096, 1, 0
        %v1105 = vsel %vm1097, 1, 0
        %v1106 = vsel %vm1098, 1, 0
        %v1107 = vsel %vm1099, 1, 0
        %v1108 = vsel %vm1100, 1, 0
        %v1109 = vsel %vm1101, 1, 0
        %v1110 = vcvt.s32.f32 %v1102
        %v1111 = vcvt.s32.f32 %v1103
        %v1112 = vcvt.s32.f32 %v1104
        %v1113 = vcvt.s32.f32 %v1105
        %v1114 = vcvt.s32.f32 %v1106
        %v1115 = vcvt.s32.f32 %v1107
        %v1116 = vcvt.s32.f32 %v1108
        %v1117 = vcvt.s32.f32 %v1109
        %v1119 = vrot.slane %v1058, 1
        %vm1120 = vcmask 261120
        %v1121 = vsel %vm1120, %v1119, 0
        %1123 = vmatprep.subr.mxu0 0.0
        %1124 = vmatpush1.msra.mxu0 0.0
        %1125 = vmatprep.subr.mxu0 0.0
        %1126 = vmatpush1.msra.mxu0 0.0
        %1127 = vmatprep.subr.mxu0 0.0
        %1128 = vmatpush1.msra.mxu0 0.0
        %1129 = vmatprep.subr.mxu0 0.0
        %1130 = vmatpush1.msra.mxu0 0.0
        %1131 = vmatprep.subr.mxu0 0.0
        %1132 = vmatpush1.msra.mxu0 0.0
        %1133 = vmatprep.subr.mxu0 0.0
        %1134 = vmatpush1.msra.mxu0 0.0
        %1135 = vmatprep.subr.mxu0 0.0
        %1136 = vmatpush1.msra.mxu0 0.0
        %1137 = vmatprep.subr.mxu0 0.0
        %1138 = vmatpush1.msra.mxu0 0.0
        %1139 = vmatprep.subr.mxu0 0.0
        %1140 = vmatpush1.msra.mxu0 0.0
        %1141 = vmatprep.subr.mxu0 0.0
        %1142 = vmatpush1.msra.mxu0 0.0
        %1143 = vmatprep.subr.mxu0 0.0
        %1144 = vmatpush1.msra.mxu0 0.0
        %1145 = vmatprep.subr.mxu0 0.0
        %1146 = vmatpush1.msra.mxu0 0.0
        %1147 = vmatprep.subr.mxu0 %v1117
        %1148 = vmatpush1.msra.mxu0 %v1116
        %1149 = vmatprep.subr.mxu0 %v1115
        %1150 = vmatpush1.msra.mxu0 %v1114
        %1151 = vmatprep.subr.mxu0 %v1113
        %1152 = vmatpush1.msra.mxu0 %v1112
        %1153 = vmatprep.subr.mxu0 %v1111
        %1154 = vmatpush1.msra.mxu0 %v1110
        %1155 = vmatprep.subr.mxu0 0.0
        %1156 = vmatpush2.msra.mxu0 0.0
        %1157 = vmatprep.subr.mxu0 0.0
        %1158 = vmatpush2.msra.mxu0 0.0
        %1159 = vmatprep.subr.mxu0 0.0
        %1160 = vmatpush2.msra.mxu0 0.0
        %1161 = vmatprep.subr.mxu0 0.0
        %1162 = vmatpush2.msra.mxu0 0.0
        %1163 = vmatprep.subr.mxu0 0.0
        %1164 = vmatpush2.msra.mxu0 0.0
        %1165 = vmatprep.subr.mxu0 0.0
        %1166 = vmatpush2.msra.mxu0 0.0
        %1167 = vmatprep.subr.mxu0 0.0
        %1168 = vmatpush2.msra.mxu0 0.0
        %1169 = vmatprep.subr.mxu0 0.0
        %1170 = vmatpush2.msra.mxu0 0.0
        %1171 = vmatprep.subr.mxu0 0.0
        %1172 = vmatpush2.msra.mxu0 0.0
        %1173 = vmatprep.subr.mxu0 0.0
        %1174 = vmatpush2.msra.mxu0 0.0
        %1175 = vmatprep.subr.mxu0 0.0
        %1176 = vmatpush2.msra.mxu0 0.0
        %1177 = vmatprep.subr.mxu0 0.0
        %1178 = vmatpush2.msra.mxu0 0.0
        %1179 = vmatprep.subr.mxu0 0.0
        %1180 = vmatpush2.msra.mxu0 0.0
        %1181 = vmatprep.subr.mxu0 0.0
        %1182 = vmatpush2.msra.mxu0 0.0
        %1183 = vmatprep.subr.mxu0 0.0
        %1184 = vmatpush2.msra.mxu0 0.0
        %1185 = vmatprep.subr.mxu0 0.0
        %1186 = vmatpush2.msra.mxu0 0.0
        %1187 = vmatprep.mubr.f32.mxu0 0.0
        %1188 = vmatmul.mubr.f32.gmra.mxu0 %v1121
        %v1189 = vpop.f32.mrf.mxu0
        %v1190 = vadd.f32 0.0, %v1189
        %v1191 = vpop.f32.mrf.mxu0
        %v1192 = vadd.f32 0.0, %v1191
        %1193 = vdwg.mxu0
        %v1194 = vsel %vm1120, %v1058, 0
        %1196 = vmatprep.subr.mxu0 0.0
        %1197 = vmatpush1.msra.mxu0 0.0
        %1198 = vmatprep.subr.mxu0 0.0
        %1199 = vmatpush1.msra.mxu0 0.0
        %1200 = vmatprep.subr.mxu0 0.0
        %1201 = vmatpush1.msra.mxu0 0.0
        %1202 = vmatprep.subr.mxu0 0.0
        %1203 = vmatpush1.msra.mxu0 0.0
        %1204 = vmatprep.subr.mxu0 0.0
        %1205 = vmatpush1.msra.mxu0 0.0
        %1206 = vmatprep.subr.mxu0 0.0
        %1207 = vmatpush1.msra.mxu0 0.0
        %1208 = vmatprep.subr.mxu0 0.0
        %1209 = vmatpush1.msra.mxu0 0.0
        %1210 = vmatprep.subr.mxu0 0.0
        %1211 = vmatpush1.msra.mxu0 0.0
        %1212 = vmatprep.subr.mxu0 0.0
        %1213 = vmatpush1.msra.mxu0 0.0
        %1214 = vmatprep.subr.mxu0 0.0
        %1215 = vmatpush1.msra.mxu0 0.0
        %1216 = vmatprep.subr.mxu0 0.0
        %1217 = vmatpush1.msra.mxu0 0.0
        %1218 = vmatprep.subr.mxu0 0.0
        %1219 = vmatpush1.msra.mxu0 0.0
        %1220 = vmatprep.subr.mxu0 %v1089
        %1221 = vmatpush1.msra.mxu0 %v1088
        %1222 = vmatprep.subr.mxu0 %v1087
        %1223 = vmatpush1.msra.mxu0 %v1086
        %1224 = vmatprep.subr.mxu0 %v1085
        %1225 = vmatpush1.msra.mxu0 %v1084
        %1226 = vmatprep.subr.mxu0 %v1083
        %1227 = vmatpush1.msra.mxu0 %v1082
        %1228 = vmatprep.subr.mxu0 0.0
        %1229 = vmatpush2.msra.mxu0 0.0
        %1230 = vmatprep.subr.mxu0 0.0
        %1231 = vmatpush2.msra.mxu0 0.0
        %1232 = vmatprep.subr.mxu0 0.0
        %1233 = vmatpush2.msra.mxu0 0.0
        %1234 = vmatprep.subr.mxu0 0.0
        %1235 = vmatpush2.msra.mxu0 0.0
        %1236 = vmatprep.subr.mxu0 0.0
        %1237 = vmatpush2.msra.mxu0 0.0
        %1238 = vmatprep.subr.mxu0 0.0
        %1239 = vmatpush2.msra.mxu0 0.0
        %1240 = vmatprep.subr.mxu0 0.0
        %1241 = vmatpush2.msra.mxu0 0.0
        %1242 = vmatprep.subr.mxu0 0.0
        %1243 = vmatpush2.msra.mxu0 0.0
        %1244 = vmatprep.subr.mxu0 0.0
        %1245 = vmatpush2.msra.mxu0 0.0
        %1246 = vmatprep.subr.mxu0 0.0
        %1247 = vmatpush2.msra.mxu0 0.0
        %1248 = vmatprep.subr.mxu0 0.0
        %1249 = vmatpush2.msra.mxu0 0.0
        %1250 = vmatprep.subr.mxu0 0.0
        %1251 = vmatpush2.msra.mxu0 0.0
        %1252 = vmatprep.subr.mxu0 0.0
        %1253 = vmatpush2.msra.mxu0 0.0
        %1254 = vmatprep.subr.mxu0 0.0
        %1255 = vmatpush2.msra.mxu0 0.0
        %1256 = vmatprep.subr.mxu0 0.0
        %1257 = vmatpush2.msra.mxu0 0.0
        %1258 = vmatprep.subr.mxu0 0.0
        %1259 = vmatpush2.msra.mxu0 0.0
        %1260 = vmatprep.mubr.f32.mxu0 0.0
        %1261 = vmatmul.mubr.f32.gmra.mxu0 %v1194
        %v1262 = vpop.f32.mrf.mxu0
        %v1263 = vadd.f32 %v1190, %v1262
        %v1264 = vpop.f32.mrf.mxu0
        %v1265 = vadd.f32 %v1192, %v1264
        %1266 = vdwg.mxu0
        %v1267 = vadd.s32 %v1062, 2
        %v1268 = vadd.s32 %v1063, 2
        %v1269 = vadd.s32 %v1064, 2
        %v1270 = vadd.s32 %v1065, 2
        %vm1271 = vcmp.eq.s32.totalorder %v272, %v1267
        %vm1272 = vcmp.eq.s32.totalorder %v1061, %v1267
        %vm1273 = vcmp.eq.s32.totalorder %v272, %v1268
        %vm1274 = vcmp.eq.s32.totalorder %v1061, %v1268
        %vm1275 = vcmp.eq.s32.totalorder %v272, %v1269
        %vm1276 = vcmp.eq.s32.totalorder %v1061, %v1269
        %vm1277 = vcmp.eq.s32.totalorder %v272, %v1270
        %vm1278 = vcmp.eq.s32.totalorder %v1061, %v1270
        %v1279 = vsel %vm1271, 1, 0
        %v1280 = vsel %vm1272, 1, 0
        %v1281 = vsel %vm1273, 1, 0
        %v1282 = vsel %vm1274, 1, 0
        %v1283 = vsel %vm1275, 1, 0
        %v1284 = vsel %vm1276, 1, 0
        %v1285 = vsel %vm1277, 1, 0
        %v1286 = vsel %vm1278, 1, 0
        %v1287 = vcvt.s32.f32 %v1279
        %v1288 = vcvt.s32.f32 %v1280
        %v1289 = vcvt.s32.f32 %v1281
        %v1290 = vcvt.s32.f32 %v1282
        %v1291 = vcvt.s32.f32 %v1283
        %v1292 = vcvt.s32.f32 %v1284
        %v1293 = vcvt.s32.f32 %v1285
        %v1294 = vcvt.s32.f32 %v1286
        %v1295 = vrot.slane %v1058, 2
        %v1296 = vsel %vm1120, %v1295, 0
        %1298 = vmatprep.subr.mxu0 0.0
        %1299 = vmatpush1.msra.mxu0 0.0
        %1300 = vmatprep.subr.mxu0 0.0
        %1301 = vmatpush1.msra.mxu0 0.0
        %1302 = vmatprep.subr.mxu0 0.0
        %1303 = vmatpush1.msra.mxu0 0.0
        %1304 = vmatprep.subr.mxu0 0.0
        %1305 = vmatpush1.msra.mxu0 0.0
        %1306 = vmatprep.subr.mxu0 0.0
        %1307 = vmatpush1.msra.mxu0 0.0
        %1308 = vmatprep.subr.mxu0 0.0
        %1309 = vmatpush1.msra.mxu0 0.0
        %1310 = vmatprep.subr.mxu0 0.0
        %1311 = vmatpush1.msra.mxu0 0.0
        %1312 = vmatprep.subr.mxu0 0.0
        %1313 = vmatpush1.msra.mxu0 0.0
        %1314 = vmatprep.subr.mxu0 0.0
        %1315 = vmatpush1.msra.mxu0 0.0
        %1316 = vmatprep.subr.mxu0 0.0
        %1317 = vmatpush1.msra.mxu0 0.0
        %1318 = vmatprep.subr.mxu0 0.0
        %1319 = vmatpush1.msra.mxu0 0.0
        %1320 = vmatprep.subr.mxu0 0.0
        %1321 = vmatpush1.msra.mxu0 0.0
        %1322 = vmatprep.subr.mxu0 %v1294
        %1323 = vmatpush1.msra.mxu0 %v1293
        %1324 = vmatprep.subr.mxu0 %v1292
        %1325 = vmatpush1.msra.mxu0 %v1291
        %1326 = vmatprep.subr.mxu0 %v1290
        %1327 = vmatpush1.msra.mxu0 %v1289
        %1328 = vmatprep.subr.mxu0 %v1288
        %1329 = vmatpush1.msra.mxu0 %v1287
        %1330 = vmatprep.subr.mxu0 0.0
        %1331 = vmatpush2.msra.mxu0 0.0
        %1332 = vmatprep.subr.mxu0 0.0
        %1333 = vmatpush2.msra.mxu0 0.0
        %1334 = vmatprep.subr.mxu0 0.0
        %1335 = vmatpush2.msra.mxu0 0.0
        %1336 = vmatprep.subr.mxu0 0.0
        %1337 = vmatpush2.msra.mxu0 0.0
        %1338 = vmatprep.subr.mxu0 0.0
        %1339 = vmatpush2.msra.mxu0 0.0
        %1340 = vmatprep.subr.mxu0 0.0
        %1341 = vmatpush2.msra.mxu0 0.0
        %1342 = vmatprep.subr.mxu0 0.0
        %1343 = vmatpush2.msra.mxu0 0.0
        %1344 = vmatprep.subr.mxu0 0.0
        %1345 = vmatpush2.msra.mxu0 0.0
        %1346 = vmatprep.subr.mxu0 0.0
        %1347 = vmatpush2.msra.mxu0 0.0
        %1348 = vmatprep.subr.mxu0 0.0
        %1349 = vmatpush2.msra.mxu0 0.0
        %1350 = vmatprep.subr.mxu0 0.0
        %1351 = vmatpush2.msra.mxu0 0.0
        %1352 = vmatprep.subr.mxu0 0.0
        %1353 = vmatpush2.msra.mxu0 0.0
        %1354 = vmatprep.subr.mxu0 0.0
        %1355 = vmatpush2.msra.mxu0 0.0
        %1356 = vmatprep.subr.mxu0 0.0
        %1357 = vmatpush2.msra.mxu0 0.0
        %1358 = vmatprep.subr.mxu0 0.0
        %1359 = vmatpush2.msra.mxu0 0.0
        %1360 = vmatprep.subr.mxu0 0.0
        %1361 = vmatpush2.msra.mxu0 0.0
        %1362 = vmatprep.mubr.f32.mxu0 0.0
        %1363 = vmatmul.mubr.f32.gmra.mxu0 %v1296
        %v1364 = vpop.f32.mrf.mxu0
        %v1365 = vadd.f32 0.0, %v1364
        %v1366 = vpop.f32.mrf.mxu0
        %v1367 = vadd.f32 0.0, %v1366
        %1368 = vdwg.mxu0
        %v1369 = vadd.f32 %v1263, %v1365
        %v1370 = vadd.f32 %v1265, %v1367
        %v1371 = vadd.s32 %v1062, 3
        %v1372 = vadd.s32 %v1063, 3
        %v1373 = vadd.s32 %v1064, 3
        %v1374 = vadd.s32 %v1065, 3
        %vm1375 = vcmp.eq.s32.totalorder %v272, %v1371
        %vm1376 = vcmp.eq.s32.totalorder %v1061, %v1371
        %vm1377 = vcmp.eq.s32.totalorder %v272, %v1372
        %vm1378 = vcmp.eq.s32.totalorder %v1061, %v1372
        %vm1379 = vcmp.eq.s32.totalorder %v272, %v1373
        %vm1380 = vcmp.eq.s32.totalorder %v1061, %v1373
        %vm1381 = vcmp.eq.s32.totalorder %v272, %v1374
        %vm1382 = vcmp.eq.s32.totalorder %v1061, %v1374
        %v1383 = vsel %vm1375, 1, 0
        %v1384 = vsel %vm1376, 1, 0
        %v1385 = vsel %vm1377, 1, 0
        %v1386 = vsel %vm1378, 1, 0
        %v1387 = vsel %vm1379, 1, 0
        %v1388 = vsel %vm1380, 1, 0
        %v1389 = vsel %vm1381, 1, 0
        %v1390 = vsel %vm1382, 1, 0
        %v1391 = vcvt.s32.f32 %v1383
        %v1392 = vcvt.s32.f32 %v1384
        %v1393 = vcvt.s32.f32 %v1385
        %v1394 = vcvt.s32.f32 %v1386
        %v1395 = vcvt.s32.f32 %v1387
        %v1396 = vcvt.s32.f32 %v1388
        %v1397 = vcvt.s32.f32 %v1389
        %v1398 = vcvt.s32.f32 %v1390
        %v1399 = vrot.slane %v1058, 3
        %v1400 = vsel %vm1120, %v1399, 0
        %1402 = vmatprep.subr.mxu0 0.0
        %1403 = vmatpush1.msra.mxu0 0.0
        %1404 = vmatprep.subr.mxu0 0.0
        %1405 = vmatpush1.msra.mxu0 0.0
        %1406 = vmatprep.subr.mxu0 0.0
        %1407 = vmatpush1.msra.mxu0 0.0
        %1408 = vmatprep.subr.mxu0 0.0
        %1409 = vmatpush1.msra.mxu0 0.0
        %1410 = vmatprep.subr.mxu0 0.0
        %1411 = vmatpush1.msra.mxu0 0.0
        %1412 = vmatprep.subr.mxu0 0.0
        %1413 = vmatpush1.msra.mxu0 0.0
        %1414 = vmatprep.subr.mxu0 0.0
        %1415 = vmatpush1.msra.mxu0 0.0
        %1416 = vmatprep.subr.mxu0 0.0
        %1417 = vmatpush1.msra.mxu0 0.0
        %1418 = vmatprep.subr.mxu0 0.0
        %1419 = vmatpush1.msra.mxu0 0.0
        %1420 = vmatprep.subr.mxu0 0.0
        %1421 = vmatpush1.msra.mxu0 0.0
        %1422 = vmatprep.subr.mxu0 0.0
        %1423 = vmatpush1.msra.mxu0 0.0
        %1424 = vmatprep.subr.mxu0 0.0
        %1425 = vmatpush1.msra.mxu0 0.0
        %1426 = vmatprep.subr.mxu0 %v1398
        %1427 = vmatpush1.msra.mxu0 %v1397
        %1428 = vmatprep.subr.mxu0 %v1396
        %1429 = vmatpush1.msra.mxu0 %v1395
        %1430 = vmatprep.subr.mxu0 %v1394
        %1431 = vmatpush1.msra.mxu0 %v1393
        %1432 = vmatprep.subr.mxu0 %v1392
        %1433 = vmatpush1.msra.mxu0 %v1391
        %1434 = vmatprep.subr.mxu0 0.0
        %1435 = vmatpush2.msra.mxu0 0.0
        %1436 = vmatprep.subr.mxu0 0.0
        %1437 = vmatpush2.msra.mxu0 0.0
        %1438 = vmatprep.subr.mxu0 0.0
        %1439 = vmatpush2.msra.mxu0 0.0
        %1440 = vmatprep.subr.mxu0 0.0
        %1441 = vmatpush2.msra.mxu0 0.0
        %1442 = vmatprep.subr.mxu0 0.0
        %1443 = vmatpush2.msra.mxu0 0.0
        %1444 = vmatprep.subr.mxu0 0.0
        %1445 = vmatpush2.msra.mxu0 0.0
        %1446 = vmatprep.subr.mxu0 0.0
        %1447 = vmatpush2.msra.mxu0 0.0
        %1448 = vmatprep.subr.mxu0 0.0
        %1449 = vmatpush2.msra.mxu0 0.0
        %1450 = vmatprep.subr.mxu0 0.0
        %1451 = vmatpush2.msra.mxu0 0.0
        %1452 = vmatprep.subr.mxu0 0.0
        %1453 = vmatpush2.msra.mxu0 0.0
        %1454 = vmatprep.subr.mxu0 0.0
        %1455 = vmatpush2.msra.mxu0 0.0
        %1456 = vmatprep.subr.mxu0 0.0
        %1457 = vmatpush2.msra.mxu0 0.0
        %1458 = vmatprep.subr.mxu0 0.0
        %1459 = vmatpush2.msra.mxu0 0.0
        %1460 = vmatprep.subr.mxu0 0.0
        %1461 = vmatpush2.msra.mxu0 0.0
        %1462 = vmatprep.subr.mxu0 0.0
        %1463 = vmatpush2.msra.mxu0 0.0
        %1464 = vmatprep.subr.mxu0 0.0
        %1465 = vmatpush2.msra.mxu0 0.0
        %1466 = vmatprep.mubr.f32.mxu0 0.0
        %1467 = vmatmul.mubr.f32.gmra.mxu0 %v1400
        %v1468 = vpop.f32.mrf.mxu0
        %v1469 = vadd.f32 0.0, %v1468
        %v1470 = vpop.f32.mrf.mxu0
        %v1471 = vadd.f32 0.0, %v1470
        %1472 = vdwg.mxu0
        %v1473 = vadd.f32 %v1369, %v1469
        %v1474 = vadd.f32 %v1370, %v1471
        %v1475 = vadd.s32 %v1062, 4
        %v1476 = vadd.s32 %v1063, 4
        %v1477 = vadd.s32 %v1064, 4
        %v1478 = vadd.s32 %v1065, 4
        %vm1479 = vcmp.eq.s32.totalorder %v272, %v1475
        %vm1480 = vcmp.eq.s32.totalorder %v1061, %v1475
        %vm1481 = vcmp.eq.s32.totalorder %v272, %v1476
        %vm1482 = vcmp.eq.s32.totalorder %v1061, %v1476
        %vm1483 = vcmp.eq.s32.totalorder %v272, %v1477
        %vm1484 = vcmp.eq.s32.totalorder %v1061, %v1477
        %vm1485 = vcmp.eq.s32.totalorder %v272, %v1478
        %vm1486 = vcmp.eq.s32.totalorder %v1061, %v1478
        %v1487 = vsel %vm1479, 1, 0
        %v1488 = vsel %vm1480, 1, 0
        %v1489 = vsel %vm1481, 1, 0
        %v1490 = vsel %vm1482, 1, 0
        %v1491 = vsel %vm1483, 1, 0
        %v1492 = vsel %vm1484, 1, 0
        %v1493 = vsel %vm1485, 1, 0
        %v1494 = vsel %vm1486, 1, 0
        %v1495 = vcvt.s32.f32 %v1487
        %v1496 = vcvt.s32.f32 %v1488
        %v1497 = vcvt.s32.f32 %v1489
        %v1498 = vcvt.s32.f32 %v1490
        %v1499 = vcvt.s32.f32 %v1491
        %v1500 = vcvt.s32.f32 %v1492
        %v1501 = vcvt.s32.f32 %v1493
        %v1502 = vcvt.s32.f32 %v1494
        %v1503 = vrot.slane %v1058, 4
        %v1504 = vsel %vm1120, %v1503, 0
        %1506 = vmatprep.subr.mxu0 0.0
        %1507 = vmatpush1.msra.mxu0 0.0
        %1508 = vmatprep.subr.mxu0 0.0
        %1509 = vmatpush1.msra.mxu0 0.0
        %1510 = vmatprep.subr.mxu0 0.0
        %1511 = vmatpush1.msra.mxu0 0.0
        %1512 = vmatprep.subr.mxu0 0.0
        %1513 = vmatpush1.msra.mxu0 0.0
        %1514 = vmatprep.subr.mxu0 0.0
        %1515 = vmatpush1.msra.mxu0 0.0
        %1516 = vmatprep.subr.mxu0 0.0
        %1517 = vmatpush1.msra.mxu0 0.0
        %1518 = vmatprep.subr.mxu0 0.0
        %1519 = vmatpush1.msra.mxu0 0.0
        %1520 = vmatprep.subr.mxu0 0.0
        %1521 = vmatpush1.msra.mxu0 0.0
        %1522 = vmatprep.subr.mxu0 0.0
        %1523 = vmatpush1.msra.mxu0 0.0
        %1524 = vmatprep.subr.mxu0 0.0
        %1525 = vmatpush1.msra.mxu0 0.0
        %1526 = vmatprep.subr.mxu0 0.0
        %1527 = vmatpush1.msra.mxu0 0.0
        %1528 = vmatprep.subr.mxu0 0.0
        %1529 = vmatpush1.msra.mxu0 0.0
        %1530 = vmatprep.subr.mxu0 %v1502
        %1531 = vmatpush1.msra.mxu0 %v1501
        %1532 = vmatprep.subr.mxu0 %v1500
        %1533 = vmatpush1.msra.mxu0 %v1499
        %1534 = vmatprep.subr.mxu0 %v1498
        %1535 = vmatpush1.msra.mxu0 %v1497
        %1536 = vmatprep.subr.mxu0 %v1496
        %1537 = vmatpush1.msra.mxu0 %v1495
        %1538 = vmatprep.subr.mxu0 0.0
        %1539 = vmatpush2.msra.mxu0 0.0
        %1540 = vmatprep.subr.mxu0 0.0
        %1541 = vmatpush2.msra.mxu0 0.0
        %1542 = vmatprep.subr.mxu0 0.0
        %1543 = vmatpush2.msra.mxu0 0.0
        %1544 = vmatprep.subr.mxu0 0.0
        %1545 = vmatpush2.msra.mxu0 0.0
        %1546 = vmatprep.subr.mxu0 0.0
        %1547 = vmatpush2.msra.mxu0 0.0
        %1548 = vmatprep.subr.mxu0 0.0
        %1549 = vmatpush2.msra.mxu0 0.0
        %1550 = vmatprep.subr.mxu0 0.0
        %1551 = vmatpush2.msra.mxu0 0.0
        %1552 = vmatprep.subr.mxu0 0.0
        %1553 = vmatpush2.msra.mxu0 0.0
        %1554 = vmatprep.subr.mxu0 0.0
        %1555 = vmatpush2.msra.mxu0 0.0
        %1556 = vmatprep.subr.mxu0 0.0
        %1557 = vmatpush2.msra.mxu0 0.0
        %1558 = vmatprep.subr.mxu0 0.0
        %1559 = vmatpush2.msra.mxu0 0.0
        %1560 = vmatprep.subr.mxu0 0.0
        %1561 = vmatpush2.msra.mxu0 0.0
        %1562 = vmatprep.subr.mxu0 0.0
        %1563 = vmatpush2.msra.mxu0 0.0
        %1564 = vmatprep.subr.mxu0 0.0
        %1565 = vmatpush2.msra.mxu0 0.0
        %1566 = vmatprep.subr.mxu0 0.0
        %1567 = vmatpush2.msra.mxu0 0.0
        %1568 = vmatprep.subr.mxu0 0.0
        %1569 = vmatpush2.msra.mxu0 0.0
        %1570 = vmatprep.mubr.f32.mxu0 0.0
        %1571 = vmatmul.mubr.f32.gmra.mxu0 %v1504
        %v1572 = vpop.f32.mrf.mxu0
        %v1573 = vadd.f32 0.0, %v1572
        %v1574 = vpop.f32.mrf.mxu0
        %v1575 = vadd.f32 0.0, %v1574
        %1576 = vdwg.mxu0
        %v1577 = vadd.f32 %v1473, %v1573
        %v1578 = vadd.f32 %v1474, %v1575
        %v1581 = vcombine.low %v1577, %v1578
        %v1583 = vunpack.c.l.s4 1966171168
        %v1584 = vunpack.c.0.s8 %v1583
        %v1585 = vlaneseq
        %v1586 = vshrl.u32 %v1585, 7
        %v1587 = vsub.s32 %v1584, %v1586
        %v1588 = vrot.slane %v1581, %v1587
        %v1590 = vunpack.c.l.s4 1966171168
        %v1591 = vunpack.c.0.s8 %v1590
        %v1592 = vlaneseq
        %v1593 = vshrl.u32 %v1592, 7
        %v1594 = vsub.s32 %v1591, %v1593
        %v1595 = vrot.slane %v1588, %v1594
        %v1597 = vlaneseq
        %vm1598 = vcmp.ge.s32.totalorder %v1597, 0
        %vm1599 = vcmp.lt.s32.totalorder %v1597, 160
        %vm1600 = vmand %vm1598, %vm1599
        %1601 = vst.msk [vmem:[%s264] sm:$0x3] %vm1600, %v1595
        %p1602 = scmp.lt.s32.totalorder %s18, 1
        %s1603 = scalar_select %p1602, %s18, 1
        %s1604 = smul.addr %s1603, 2
        %s1605 = scalar_lea.vmem %s6, %s1604
        // Predicated region
        $region49: #{_lambda_.1} parent=43 // pred_check
          %p1606 = pneg %p167
        $region50: #{_lambda_.1} parent=43 // pred_check_branch
          %1608 = sbr.rel (%p1606) target = $region52
        $region51: #{_lambda_.1} parent=43 // pred_region
          _
        $region52: #{_lambda_.1} parent=43 // pred_fallthru
          _
      $region44: #{_lambda_.1} parent=5 // pred_fallthru
        _
      %p1609 = scmp.le.s32.totalorder 2, %s13
      // Predicated region
      $region53: #{_lambda_.1} parent=5 // pred_check
        %p1610 = pneg %p1609
      $region54: #{_lambda_.1} parent=5 // pred_check_branch
        %1612 = sbr.rel (%p1610) target = $region56
      $region55: #{_lambda_.1} parent=5 // pred_region
        %s1613 = ssub.s32 %s13, 2
        // Predicated region
        $region57: #{_lambda_.1} parent=55 // pred_check
          %p1614 = pneg %p173
        $region58: #{_lambda_.1} parent=55 // pred_check_branch
          %1616 = sbr.rel (%p1614) target = $region60
        $region59: #{_lambda_.1} parent=55 // pred_region
          %p1617 = scmp.lt.s32.totalorder %s19, 1
          %s1618 = scalar_select %p1617, %s19, 1
          %s1619 = smul.addr %s1618, 2
          %s1620 = scalar_lea.vmem %s6, %s1619
        $region60: #{_lambda_.1} parent=55 // pred_fallthru
          _
      $region56: #{_lambda_.1} parent=5 // pred_fallthru
        _
    $region6: #{_lambda_.1} parent=1 // loop_footer
      %s17 = sadd.s32 1, %s13
    $region7: #{_lambda_.1} parent=1 // loop_footer_branch
      %12 = sbr.rel target = $region3
    $region8: #{_lambda_.1} parent=1 // loop_exit
      _
    %1621 = vsyncpa [#allocation3], 1
    %s1622 = scalar_lea.sflag [#allocation3], 1
    %1623 = vsyncpa %s1622, 1

</llo_original>
